<compile_context>
chip_gen: v7x
topology: tpu7x:2x2x1
jax: 0.10.0
libtpu: 0.0.40
codegen_flags: <defaults>
</compile_context>

<pallas_src>
import functools

import jax
import jax.numpy as jnp
from jax.experimental import pallas as pl
from jax.experimental.pallas import tpu as pltpu

# ---------------- small synthetic RoBERTa config ----------------
SEQ = 8          # sequence length (token count)
HID = 32         # hidden size
NUM_HEADS = 4
HEAD_DIM = HID // NUM_HEADS
INTER = 64       # FFN intermediate size
NUM_LAYERS = 8   # -> 9 hidden states; levels [7, -1] are valid
VOCAB = 100
MAX_POS = 16
TYPE_VOCAB = 2
PAD_IDX = 1      # RoBERTa padding_idx; positions start at PAD_IDX + 1
LN_EPS = 1e-12
DTYPE = jnp.float32


# ---------------- in-kernel helpers ----------------
def _layernorm(x, gamma, beta):
    mean = jnp.mean(x, axis=-1, keepdims=True)
    var = jnp.mean((x - mean) ** 2, axis=-1, keepdims=True)
    inv = jax.lax.rsqrt(var + LN_EPS)
    return (x - mean) * inv * gamma + beta


def _gelu(x):
    # TODO(synk): HF RoBERTa uses exact erf GELU; tanh approximation is used
    # here for a clean Mosaic lowering (difference is ~1e-3 relative).
    c = 0.7978845608028654  # sqrt(2/pi)
    return 0.5 * x * (1.0 + jnp.tanh(c * (x + 0.044715 * x * x * x)))


# ---------------- fused encoder kernel ----------------
def encoder_kernel(emb_ref, eg_ref, eb_ref,
                   wqkv_ref, bqkv_ref, wo_ref, bo_ref,
                   g1_ref, be1_ref, w1_ref, b1_ref, w2_ref, b2_ref,
                   g2_ref, be2_ref,
                   out_ref, h_ref, *, hs_idx):
    """Grid axis = encoder layer (sequential).  h_ref carries the activation."""
    layer = pl.program_id(0)

    # --- layer 0: embedding LayerNorm (hidden_states[0]) ---
    @pl.when(layer == 0)
    def _init():
        h0 = _layernorm(emb_ref[...], eg_ref[...], eb_ref[...])
        h_ref[...] = h0
        for out_slot, hs_i in enumerate(hs_idx):
            if hs_i == 0:
                out_ref[out_slot] = h0

    x = h_ref[...]

    # --- fused QKV projection (scale already folded into Wq/bq) ---
    qkv = jnp.dot(x, wqkv_ref[0], preferred_element_type=jnp.float32) + bqkv_ref[0]
    q = qkv[:, 0 * HID:1 * HID]
    k = qkv[:, 1 * HID:2 * HID]
    v = qkv[:, 2 * HID:3 * HID]

    # --- multi-head attention; per-head context folded straight into Wo ---
    wo = wo_ref[0]
    attn = bo_ref[0]                                  # (1, HID), broadcasts
    for h in range(NUM_HEADS):
        lo, hi = h * HEAD_DIM, (h + 1) * HEAD_DIM
        qs = q[:, lo:hi]
        ks = k[:, lo:hi]
        vs = v[:, lo:hi]
        # scores = qs @ ks.T  (contract last dims; no explicit transpose)
        s = jax.lax.dot_general(qs, ks, (((1,), (1,)), ((), ())),
                                preferred_element_type=jnp.float32)
        m = jnp.max(s, axis=-1, keepdims=True)
        e = jnp.exp(s - m)
        denom = jnp.sum(e, axis=-1, keepdims=True)
        p = e * pl.reciprocal(denom, approx=True)
        ctx_h = jnp.dot(p, vs, preferred_element_type=jnp.float32)
        attn = attn + jnp.dot(ctx_h, wo[lo:hi, :],
                              preferred_element_type=jnp.float32)

    h1 = _layernorm(x + attn, g1_ref[0], be1_ref[0])

    # --- FFN ---
    ff = jnp.dot(h1, w1_ref[0], preferred_element_type=jnp.float32) + b1_ref[0]
    ff = _gelu(ff)
    ff = jnp.dot(ff, w2_ref[0], preferred_element_type=jnp.float32) + b2_ref[0]
    h_new = _layernorm(h1 + ff, g2_ref[0], be2_ref[0])

    h_ref[...] = h_new

    # --- emit only the hidden states actually requested ---
    for out_slot, hs_i in enumerate(hs_idx):
        if hs_i >= 1:
            @pl.when(layer == hs_i - 1)
            def _store(out_slot=out_slot):
                out_ref[out_slot] = h_new


def _encoder(emb, p, hs_idx):
    """Run the full encoder in one pallas_call; returns (len(hs_idx), SEQ, HID)."""
    n_out = len(hs_idx)

    def whole(shape):
        return pl.BlockSpec(shape, lambda l: (0,) * len(shape))

    def per_layer(shape):
        return pl.BlockSpec((1,) + shape, lambda l: (l,) + (0,) * len(shape))

    in_specs = [
        whole((SEQ, HID)), whole((1, HID)), whole((1, HID)),
        per_layer((HID, 3 * HID)), per_layer((1, 3 * HID)),
        per_layer((HID, HID)), per_layer((1, HID)),
        per_layer((1, HID)), per_layer((1, HID)),
        per_layer((HID, INTER)), per_layer((1, INTER)),
        per_layer((INTER, HID)), per_layer((1, HID)),
        per_layer((1, HID)), per_layer((1, HID)),
    ]
    args = (emb, p["emb_ln_g"], p["emb_ln_b"],
            p["wqkv"], p["bqkv"], p["wo"], p["bo"],
            p["ln1_g"], p["ln1_b"], p["w1"], p["b1"],
            p["w2"], p["b2"], p["ln2_g"], p["ln2_b"])

    return pl.pallas_call(
        functools.partial(encoder_kernel, hs_idx=hs_idx),
        out_shape=jax.ShapeDtypeStruct((n_out, SEQ, HID), DTYPE),
        grid=(NUM_LAYERS,),
        in_specs=in_specs,
        out_specs=pl.BlockSpec((n_out, SEQ, HID), lambda l: (0, 0, 0)),
        scratch_shapes=[pltpu.VMEM((SEQ, HID), jnp.float32)],
        compiler_params=pltpu.CompilerParams(
            dimension_semantics=("arbitrary",)),
    )(*args)


# ---------------- parameter construction (deterministic, stacked) ----------------
def make_params(key):
    def nrm(kk, shape, std=0.02):
        return (std * jax.random.normal(kk, shape)).astype(DTYPE)

    keys = jax.random.split(key, 7)
    scale = 1.0 / (HEAD_DIM ** 0.5)

    # Fused QKV weight; fold the attention scale into the Q block (and bias).
    wqkv = nrm(keys[3], (NUM_LAYERS, HID, 3 * HID))
    wqkv = wqkv.at[:, :, :HID].multiply(scale)
    bqkv = jnp.zeros((NUM_LAYERS, 1, 3 * HID), DTYPE)   # Q bias would be scaled too

    return {
        "word_emb": nrm(keys[0], (VOCAB, HID)),
        "pos_emb": nrm(keys[1], (MAX_POS, HID)),
        "type_emb": nrm(keys[2], (TYPE_VOCAB, HID)),
        "emb_ln_g": jnp.ones((1, HID), DTYPE),
        "emb_ln_b": jnp.zeros((1, HID), DTYPE),
        "wqkv": wqkv, "bqkv": bqkv,
        "wo": nrm(keys[4], (NUM_LAYERS, HID, HID)),
        "bo": jnp.zeros((NUM_LAYERS, 1, HID), DTYPE),
        "ln1_g": jnp.ones((NUM_LAYERS, 1, HID), DTYPE),
        "ln1_b": jnp.zeros((NUM_LAYERS, 1, HID), DTYPE),
        "w1": nrm(keys[5], (NUM_LAYERS, HID, INTER)),
        "b1": jnp.zeros((NUM_LAYERS, 1, INTER), DTYPE),
        "w2": nrm(keys[6], (NUM_LAYERS, INTER, HID)),
        "b2": jnp.zeros((NUM_LAYERS, 1, HID), DTYPE),
        "ln2_g": jnp.ones((NUM_LAYERS, 1, HID), DTYPE),
        "ln2_b": jnp.zeros((NUM_LAYERS, 1, HID), DTYPE),
    }


# ---------------- RoBERTa.forward equivalent ----------------
@functools.partial(jax.jit, static_argnames=("level",))
def roberta_forward(ids, params, level=(7, -1)):
    """ids: int32 (SEQ,) token ids.  Returns (SEQ, len(level)*HID) like E(ids)."""
    # TODO(synk): RobertaTokenizer.encode / convert_ids_to_tokens is string
    # processing with no Pallas equivalent; integer token ids are taken directly.
    word = jnp.take(params["word_emb"], ids, axis=0)
    pos = params["pos_emb"][PAD_IDX + 1:PAD_IDX + 1 + SEQ]   # RoBERTa position offset
    typ = jnp.take(params["type_emb"], jnp.zeros((SEQ,), jnp.int32), axis=0)
    emb = (word + pos + typ).astype(DTYPE)

    n_hidden = NUM_LAYERS + 1
    hs_idx = tuple(i if i >= 0 else n_hidden + i for i in level)

    sel = _encoder(emb, params, hs_idx)            # (len(level), SEQ, HID)
    # cat(hidden_states)[layers].transpose(0, 1) -> flatten(-2, -1)
    return sel.transpose(1, 0, 2).reshape(SEQ, len(hs_idx) * HID)


if __name__ == "__main__":
    key = jax.random.PRNGKey(0)
    pkey, ikey = jax.random.split(key)
    params = make_params(pkey)
    ids = jax.random.randint(ikey, (SEQ,), 0, VOCAB, dtype=jnp.int32)

    out = roberta_forward(ids, params)
    out = jax.block_until_ready(out)
    assert out.shape == (SEQ, 2 * HID), out.shape
    assert out.dtype == DTYPE
    assert bool(jnp.all(jnp.isfinite(out)))
    print("KERNEL_OK")
</pallas_src>

<mosaic_0001>
module attributes {stable_mosaic.version = 11 : i64} {
  func.func @encoder_kernel(%arg0: i32, %arg1: memref<8x32xf32, #tpu.memory_space<vmem>>, %arg2: memref<1x32xf32, #tpu.memory_space<vmem>>, %arg3: memref<1x32xf32, #tpu.memory_space<vmem>>, %arg4: memref<1x32x96xf32, #tpu.memory_space<vmem>>, %arg5: memref<1x1x96xf32, #tpu.memory_space<vmem>>, %arg6: memref<1x32x32xf32, #tpu.memory_space<vmem>>, %arg7: memref<1x1x32xf32, #tpu.memory_space<vmem>>, %arg8: memref<1x1x32xf32, #tpu.memory_space<vmem>>, %arg9: memref<1x1x32xf32, #tpu.memory_space<vmem>>, %arg10: memref<1x32x64xf32, #tpu.memory_space<vmem>>, %arg11: memref<1x1x64xf32, #tpu.memory_space<vmem>>, %arg12: memref<1x64x32xf32, #tpu.memory_space<vmem>>, %arg13: memref<1x1x32xf32, #tpu.memory_space<vmem>>, %arg14: memref<1x1x32xf32, #tpu.memory_space<vmem>>, %arg15: memref<1x1x32xf32, #tpu.memory_space<vmem>>, %arg16: memref<2x8x32xf32, #tpu.memory_space<vmem>>, %arg17: memref<8x32xf32, #tpu.memory_space<vmem>>) attributes {dimension_semantics = [#tpu.dimension_semantics<arbitrary>], iteration_bounds = array<i64: 8>, scalar_prefetch = 0 : i64, scratch_operands = 1 : i64, tpu.core_type = #tpu.core_type<tc>, window_params = [{pipeline_mode = #tpu.pipeline_mode<synchronous>, transform_indices = @transform_0, window_bounds = array<i64: 8, 32>}, {pipeline_mode = #tpu.pipeline_mode<synchronous>, transform_indices = @transform_1, window_bounds = array<i64: 1, 32>}, {pipeline_mode = #tpu.pipeline_mode<synchronous>, transform_indices = @transform_2, window_bounds = array<i64: 1, 32>}, {transform_indices = @transform_3, window_bounds = array<i64: 1, 32, 96>}, {transform_indices = @transform_4, window_bounds = array<i64: 1, 1, 96>}, {transform_indices = @transform_5, window_bounds = array<i64: 1, 32, 32>}, {transform_indices = @transform_6, window_bounds = array<i64: 1, 1, 32>}, {transform_indices = @transform_7, window_bounds = array<i64: 1, 1, 32>}, {transform_indices = @transform_8, window_bounds = array<i64: 1, 1, 32>}, {transform_indices = @transform_9, window_bounds = array<i64: 1, 32, 64>}, {transform_indices = @transform_10, window_bounds = array<i64: 1, 1, 64>}, {transform_indices = @transform_11, window_bounds = array<i64: 1, 64, 32>}, {transform_indices = @transform_12, window_bounds = array<i64: 1, 1, 32>}, {transform_indices = @transform_13, window_bounds = array<i64: 1, 1, 32>}, {transform_indices = @transform_14, window_bounds = array<i64: 1, 1, 32>}, {pipeline_mode = #tpu.pipeline_mode<synchronous>, transform_indices = @transform_15, window_bounds = array<i64: 2, 8, 32>}]} {
    %c0_i32 = arith.constant 0 : i32
    %0 = arith.cmpi eq, %arg0, %c0_i32 : i32
    %1 = arith.extui %0 : i1 to i32
    %c0_i32_0 = arith.constant 0 : i32
    %2 = arith.cmpi ne, %1, %c0_i32_0 : i32
    scf.if %2 {
      %c0_78 = arith.constant 0 : index
      %c0_79 = arith.constant 0 : index
      %179 = vector.load %arg1[%c0_78, %c0_79] : memref<8x32xf32, #tpu.memory_space<vmem>>, vector<8x32xf32>
      %c0_80 = arith.constant 0 : index
      %c0_81 = arith.constant 0 : index
      %180 = vector.load %arg2[%c0_80, %c0_81] : memref<1x32xf32, #tpu.memory_space<vmem>>, vector<1x32xf32>
      %c0_82 = arith.constant 0 : index
      %c0_83 = arith.constant 0 : index
      %181 = vector.load %arg3[%c0_82, %c0_83] : memref<1x32xf32, #tpu.memory_space<vmem>>, vector<1x32xf32>
      %cst_84 = arith.constant dense<0.000000e+00> : vector<8xf32>
      %182 = vector.multi_reduction <add>, %179, %cst_84 [1] : vector<8x32xf32> to vector<8xf32>
      %183 = vector.shape_cast %182 : vector<8xf32> to vector<8x1xf32>
      %cst_85 = arith.constant 3.200000e+01 : f32
      %184 = vector.broadcast %cst_85 : f32 to vector<8x1xf32>
      %185 = arith.divf %183, %184 : vector<8x1xf32>
      %186 = vector.broadcast %185 : vector<8x1xf32> to vector<8x32xf32>
      %187 = arith.subf %179, %186 : vector<8x32xf32>
      %188 = arith.mulf %187, %187 : vector<8x32xf32>
      %cst_86 = arith.constant dense<0.000000e+00> : vector<8xf32>
      %189 = vector.multi_reduction <add>, %188, %cst_86 [1] : vector<8x32xf32> to vector<8xf32>
      %190 = vector.shape_cast %189 : vector<8xf32> to vector<8x1xf32>
      %cst_87 = arith.constant 3.200000e+01 : f32
      %191 = vector.broadcast %cst_87 : f32 to vector<8x1xf32>
      %192 = arith.divf %190, %191 : vector<8x1xf32>
      %cst_88 = arith.constant 9.99999996E-13 : f32
      %193 = vector.broadcast %cst_88 : f32 to vector<8x1xf32>
      %194 = arith.addf %192, %193 : vector<8x1xf32>
      %195 = math.rsqrt %194 : vector<8x1xf32>
      %196 = vector.broadcast %185 : vector<8x1xf32> to vector<8x32xf32>
      %197 = arith.subf %179, %196 : vector<8x32xf32>
      %198 = vector.broadcast %195 : vector<8x1xf32> to vector<8x32xf32>
      %199 = arith.mulf %197, %198 : vector<8x32xf32>
      %200 = vector.broadcast %180 : vector<1x32xf32> to vector<8x32xf32>
      %201 = arith.mulf %199, %200 : vector<8x32xf32>
      %202 = vector.broadcast %181 : vector<1x32xf32> to vector<8x32xf32>
      %203 = arith.addf %201, %202 : vector<8x32xf32>
      %c0_89 = arith.constant 0 : index
      %c0_90 = arith.constant 0 : index
      %204 = vector.load %arg17[%c0_89, %c0_90] : memref<8x32xf32, #tpu.memory_space<vmem>>, vector<8x32xf32>
      tpu.vector_store %arg17[%c0_89, %c0_90], %203 {strides = array<i32>} : memref<8x32xf32, #tpu.memory_space<vmem>>, vector<8x32xf32>,
    } else {
    }
    %c0 = arith.constant 0 : index
    %c0_1 = arith.constant 0 : index
    %3 = vector.load %arg17[%c0, %c0_1] : memref<8x32xf32, #tpu.memory_space<vmem>>, vector<8x32xf32>
    %c0_2 = arith.constant 0 : index
    %c0_3 = arith.constant 0 : index
    %c0_4 = arith.constant 0 : index
    %4 = vector.load %arg4[%c0_2, %c0_3, %c0_4] : memref<1x32x96xf32, #tpu.memory_space<vmem>>, vector<1x32x96xf32>
    %5 = vector.shape_cast %4 : vector<1x32x96xf32> to vector<32x96xf32>
    %cst = arith.constant dense<0.000000e+00> : vector<8x96xf32>
    %6 = tpu.matmul %3, %5, %cst {dimension_numbers = #tpu.dot_dimension_numbers<[1], [0], [0], [1], [0, 0, 1, 1], [], []>} : vector<8x32xf32>, vector<32x96xf32>, vector<8x96xf32> -> vector<8x96xf32>
    %c0_5 = arith.constant 0 : index
    %c0_6 = arith.constant 0 : index
    %c0_7 = arith.constant 0 : index
    %7 = vector.load %arg5[%c0_5, %c0_6, %c0_7] : memref<1x1x96xf32, #tpu.memory_space<vmem>>, vector<1x1x96xf32>
    %8 = vector.shape_cast %7 : vector<1x1x96xf32> to vector<1x96xf32>
    %9 = vector.broadcast %8 : vector<1x96xf32> to vector<8x96xf32>
    %10 = arith.addf %6, %9 : vector<8x96xf32>
    %11 = vector.extract_strided_slice %10 {offsets = [0, 0], sizes = [8, 32], strides = [1, 1]} : vector<8x96xf32> to vector<8x32xf32>
    %12 = vector.extract_strided_slice %10 {offsets = [0, 32], sizes = [8, 32], strides = [1, 1]} : vector<8x96xf32> to vector<8x32xf32>
    %13 = vector.extract_strided_slice %10 {offsets = [0, 64], sizes = [8, 32], strides = [1, 1]} : vector<8x96xf32> to vector<8x32xf32>
    %c0_8 = arith.constant 0 : index
    %c0_9 = arith.constant 0 : index
    %c0_10 = arith.constant 0 : index
    %14 = vector.load %arg6[%c0_8, %c0_9, %c0_10] : memref<1x32x32xf32, #tpu.memory_space<vmem>>, vector<1x32x32xf32>
    %15 = vector.shape_cast %14 : vector<1x32x32xf32> to vector<32x32xf32>
    %c0_11 = arith.constant 0 : index
    %c0_12 = arith.constant 0 : index
    %c0_13 = arith.constant 0 : index
    %16 = vector.load %arg7[%c0_11, %c0_12, %c0_13] : memref<1x1x32xf32, #tpu.memory_space<vmem>>, vector<1x1x32xf32>
    %17 = vector.shape_cast %16 : vector<1x1x32xf32> to vector<1x32xf32>
    %18 = vector.extract_strided_slice %11 {offsets = [0, 0], sizes = [8, 8], strides = [1, 1]} : vector<8x32xf32> to vector<8x8xf32>
    %19 = vector.extract_strided_slice %12 {offsets = [0, 0], sizes = [8, 8], strides = [1, 1]} : vector<8x32xf32> to vector<8x8xf32>
    %20 = vector.extract_strided_slice %13 {offsets = [0, 0], sizes = [8, 8], strides = [1, 1]} : vector<8x32xf32> to vector<8x8xf32>
    %cst_14 = arith.constant dense<0.000000e+00> : vector<8x8xf32>
    %21 = tpu.matmul %18, %19, %cst_14 {dimension_numbers = #tpu.dot_dimension_numbers<[1], [1], [0], [0], [0, 0, 1, 0], [], []>} : vector<8x8xf32>, vector<8x8xf32>, vector<8x8xf32> -> vector<8x8xf32>
    %cst_15 = arith.constant dense<0xFF800000> : vector<8xf32>
    %22 = vector.multi_reduction <maximumf>, %21, %cst_15 [1] : vector<8x8xf32> to vector<8xf32>
    %23 = vector.shape_cast %22 : vector<8xf32> to vector<8x1xf32>
    %24 = vector.broadcast %23 : vector<8x1xf32> to vector<8x8xf32>
    %25 = arith.subf %21, %24 : vector<8x8xf32>
    %26 = math.exp %25 : vector<8x8xf32>
    %cst_16 = arith.constant dense<0.000000e+00> : vector<8xf32>
    %27 = vector.multi_reduction <add>, %26, %cst_16 [1] : vector<8x8xf32> to vector<8xf32>
    %28 = vector.shape_cast %27 : vector<8xf32> to vector<8x1xf32>
    %29 = tpu.reciprocal %28 {approx = true} : vector<8x1xf32> -> vector<8x1xf32>
    %30 = vector.broadcast %29 : vector<8x1xf32> to vector<8x8xf32>
    %31 = arith.mulf %26, %30 : vector<8x8xf32>
    %cst_17 = arith.constant dense<0.000000e+00> : vector<8x8xf32>
    %32 = tpu.matmul %31, %20, %cst_17 {dimension_numbers = #tpu.dot_dimension_numbers<[1], [0], [0], [1], [0, 0, 1, 1], [], []>} : vector<8x8xf32>, vector<8x8xf32>, vector<8x8xf32> -> vector<8x8xf32>
    %33 = vector.extract_strided_slice %15 {offsets = [0, 0], sizes = [8, 32], strides = [1, 1]} : vector<32x32xf32> to vector<8x32xf32>
    %cst_18 = arith.constant dense<0.000000e+00> : vector<8x32xf32>
    %34 = tpu.matmul %32, %33, %cst_18 {dimension_numbers = #tpu.dot_dimension_numbers<[1], [0], [0], [1], [0, 0, 1, 1], [], []>} : vector<8x8xf32>, vector<8x32xf32>, vector<8x32xf32> -> vector<8x32xf32>
    %35 = vector.broadcast %17 : vector<1x32xf32> to vector<8x32xf32>
    %36 = arith.addf %35, %34 : vector<8x32xf32>
    %37 = vector.extract_strided_slice %11 {offsets = [0, 8], sizes = [8, 8], strides = [1, 1]} : vector<8x32xf32> to vector<8x8xf32>
    %38 = vector.extract_strided_slice %12 {offsets = [0, 8], sizes = [8, 8], strides = [1, 1]} : vector<8x32xf32> to vector<8x8xf32>
    %39 = vector.extract_strided_slice %13 {offsets = [0, 8], sizes = [8, 8], strides = [1, 1]} : vector<8x32xf32> to vector<8x8xf32>
    %cst_19 = arith.constant dense<0.000000e+00> : vector<8x8xf32>
    %40 = tpu.matmul %37, %38, %cst_19 {dimension_numbers = #tpu.dot_dimension_numbers<[1], [1], [0], [0], [0, 0, 1, 0], [], []>} : vector<8x8xf32>, vector<8x8xf32>, vector<8x8xf32> -> vector<8x8xf32>
    %cst_20 = arith.constant dense<0xFF800000> : vector<8xf32>
    %41 = vector.multi_reduction <maximumf>, %40, %cst_20 [1] : vector<8x8xf32> to vector<8xf32>
    %42 = vector.shape_cast %41 : vector<8xf32> to vector<8x1xf32>
    %43 = vector.broadcast %42 : vector<8x1xf32> to vector<8x8xf32>
    %44 = arith.subf %40, %43 : vector<8x8xf32>
    %45 = math.exp %44 : vector<8x8xf32>
    %cst_21 = arith.constant dense<0.000000e+00> : vector<8xf32>
    %46 = vector.multi_reduction <add>, %45, %cst_21 [1] : vector<8x8xf32> to vector<8xf32>
    %47 = vector.shape_cast %46 : vector<8xf32> to vector<8x1xf32>
    %48 = tpu.reciprocal %47 {approx = true} : vector<8x1xf32> -> vector<8x1xf32>
    %49 = vector.broadcast %48 : vector<8x1xf32> to vector<8x8xf32>
    %50 = arith.mulf %45, %49 : vector<8x8xf32>
    %cst_22 = arith.constant dense<0.000000e+00> : vector<8x8xf32>
    %51 = tpu.matmul %50, %39, %cst_22 {dimension_numbers = #tpu.dot_dimension_numbers<[1], [0], [0], [1], [0, 0, 1, 1], [], []>} : vector<8x8xf32>, vector<8x8xf32>, vector<8x8xf32> -> vector<8x8xf32>
    %52 = vector.extract_strided_slice %15 {offsets = [8, 0], sizes = [8, 32], strides = [1, 1]} : vector<32x32xf32> to vector<8x32xf32>
    %cst_23 = arith.constant dense<0.000000e+00> : vector<8x32xf32>
    %53 = tpu.matmul %51, %52, %cst_23 {dimension_numbers = #tpu.dot_dimension_numbers<[1], [0], [0], [1], [0, 0, 1, 1], [], []>} : vector<8x8xf32>, vector<8x32xf32>, vector<8x32xf32> -> vector<8x32xf32>
    %54 = arith.addf %36, %53 : vector<8x32xf32>
    %55 = vector.extract_strided_slice %11 {offsets = [0, 16], sizes = [8, 8], strides = [1, 1]} : vector<8x32xf32> to vector<8x8xf32>
    %56 = vector.extract_strided_slice %12 {offsets = [0, 16], sizes = [8, 8], strides = [1, 1]} : vector<8x32xf32> to vector<8x8xf32>
    %57 = vector.extract_strided_slice %13 {offsets = [0, 16], sizes = [8, 8], strides = [1, 1]} : vector<8x32xf32> to vector<8x8xf32>
    %cst_24 = arith.constant dense<0.000000e+00> : vector<8x8xf32>
    %58 = tpu.matmul %55, %56, %cst_24 {dimension_numbers = #tpu.dot_dimension_numbers<[1], [1], [0], [0], [0, 0, 1, 0], [], []>} : vector<8x8xf32>, vector<8x8xf32>, vector<8x8xf32> -> vector<8x8xf32>
    %cst_25 = arith.constant dense<0xFF800000> : vector<8xf32>
    %59 = vector.multi_reduction <maximumf>, %58, %cst_25 [1] : vector<8x8xf32> to vector<8xf32>
    %60 = vector.shape_cast %59 : vector<8xf32> to vector<8x1xf32>
    %61 = vector.broadcast %60 : vector<8x1xf32> to vector<8x8xf32>
    %62 = arith.subf %58, %61 : vector<8x8xf32>
    %63 = math.exp %62 : vector<8x8xf32>
    %cst_26 = arith.constant dense<0.000000e+00> : vector<8xf32>
    %64 = vector.multi_reduction <add>, %63, %cst_26 [1] : vector<8x8xf32> to vector<8xf32>
    %65 = vector.shape_cast %64 : vector<8xf32> to vector<8x1xf32>
    %66 = tpu.reciprocal %65 {approx = true} : vector<8x1xf32> -> vector<8x1xf32>
    %67 = vector.broadcast %66 : vector<8x1xf32> to vector<8x8xf32>
    %68 = arith.mulf %63, %67 : vector<8x8xf32>
    %cst_27 = arith.constant dense<0.000000e+00> : vector<8x8xf32>
    %69 = tpu.matmul %68, %57, %cst_27 {dimension_numbers = #tpu.dot_dimension_numbers<[1], [0], [0], [1], [0, 0, 1, 1], [], []>} : vector<8x8xf32>, vector<8x8xf32>, vector<8x8xf32> -> vector<8x8xf32>
    %70 = vector.extract_strided_slice %15 {offsets = [16, 0], sizes = [8, 32], strides = [1, 1]} : vector<32x32xf32> to vector<8x32xf32>
    %cst_28 = arith.constant dense<0.000000e+00> : vector<8x32xf32>
    %71 = tpu.matmul %69, %70, %cst_28 {dimension_numbers = #tpu.dot_dimension_numbers<[1], [0], [0], [1], [0, 0, 1, 1], [], []>} : vector<8x8xf32>, vector<8x32xf32>, vector<8x32xf32> -> vector<8x32xf32>
    %72 = arith.addf %54, %71 : vector<8x32xf32>
    %73 = vector.extract_strided_slice %11 {offsets = [0, 24], sizes = [8, 8], strides = [1, 1]} : vector<8x32xf32> to vector<8x8xf32>
    %74 = vector.extract_strided_slice %12 {offsets = [0, 24], sizes = [8, 8], strides = [1, 1]} : vector<8x32xf32> to vector<8x8xf32>
    %75 = vector.extract_strided_slice %13 {offsets = [0, 24], sizes = [8, 8], strides = [1, 1]} : vector<8x32xf32> to vector<8x8xf32>
    %cst_29 = arith.constant dense<0.000000e+00> : vector<8x8xf32>
    %76 = tpu.matmul %73, %74, %cst_29 {dimension_numbers = #tpu.dot_dimension_numbers<[1], [1], [0], [0], [0, 0, 1, 0], [], []>} : vector<8x8xf32>, vector<8x8xf32>, vector<8x8xf32> -> vector<8x8xf32>
    %cst_30 = arith.constant dense<0xFF800000> : vector<8xf32>
    %77 = vector.multi_reduction <maximumf>, %76, %cst_30 [1] : vector<8x8xf32> to vector<8xf32>
    %78 = vector.shape_cast %77 : vector<8xf32> to vector<8x1xf32>
    %79 = vector.broadcast %78 : vector<8x1xf32> to vector<8x8xf32>
    %80 = arith.subf %76, %79 : vector<8x8xf32>
    %81 = math.exp %80 : vector<8x8xf32>
    %cst_31 = arith.constant dense<0.000000e+00> : vector<8xf32>
    %82 = vector.multi_reduction <add>, %81, %cst_31 [1] : vector<8x8xf32> to vector<8xf32>
    %83 = vector.shape_cast %82 : vector<8xf32> to vector<8x1xf32>
    %84 = tpu.reciprocal %83 {approx = true} : vector<8x1xf32> -> vector<8x1xf32>
    %85 = vector.broadcast %84 : vector<8x1xf32> to vector<8x8xf32>
    %86 = arith.mulf %81, %85 : vector<8x8xf32>
    %cst_32 = arith.constant dense<0.000000e+00> : vector<8x8xf32>
    %87 = tpu.matmul %86, %75, %cst_32 {dimension_numbers = #tpu.dot_dimension_numbers<[1], [0], [0], [1], [0, 0, 1, 1], [], []>} : vector<8x8xf32>, vector<8x8xf32>, vector<8x8xf32> -> vector<8x8xf32>
    %88 = vector.extract_strided_slice %15 {offsets = [24, 0], sizes = [8, 32], strides = [1, 1]} : vector<32x32xf32> to vector<8x32xf32>
    %cst_33 = arith.constant dense<0.000000e+00> : vector<8x32xf32>
    %89 = tpu.matmul %87, %88, %cst_33 {dimension_numbers = #tpu.dot_dimension_numbers<[1], [0], [0], [1], [0, 0, 1, 1], [], []>} : vector<8x8xf32>, vector<8x32xf32>, vector<8x32xf32> -> vector<8x32xf32>
    %90 = arith.addf %72, %89 : vector<8x32xf32>
    %91 = arith.addf %3, %90 : vector<8x32xf32>
    %c0_34 = arith.constant 0 : index
    %c0_35 = arith.constant 0 : index
    %c0_36 = arith.constant 0 : index
    %92 = vector.load %arg8[%c0_34, %c0_35, %c0_36] : memref<1x1x32xf32, #tpu.memory_space<vmem>>, vector<1x1x32xf32>
    %93 = vector.shape_cast %92 : vector<1x1x32xf32> to vector<1x32xf32>
    %c0_37 = arith.constant 0 : index
    %c0_38 = arith.constant 0 : index
    %c0_39 = arith.constant 0 : index
    %94 = vector.load %arg9[%c0_37, %c0_38, %c0_39] : memref<1x1x32xf32, #tpu.memory_space<vmem>>, vector<1x1x32xf32>
    %95 = vector.shape_cast %94 : vector<1x1x32xf32> to vector<1x32xf32>
    %cst_40 = arith.constant dense<0.000000e+00> : vector<8xf32>
    %96 = vector.multi_reduction <add>, %91, %cst_40 [1] : vector<8x32xf32> to vector<8xf32>
    %97 = vector.shape_cast %96 : vector<8xf32> to vector<8x1xf32>
    %cst_41 = arith.constant 3.200000e+01 : f32
    %98 = vector.broadcast %cst_41 : f32 to vector<8x1xf32>
    %99 = arith.divf %97, %98 : vector<8x1xf32>
    %100 = vector.broadcast %99 : vector<8x1xf32> to vector<8x32xf32>
    %101 = arith.subf %91, %100 : vector<8x32xf32>
    %102 = arith.mulf %101, %101 : vector<8x32xf32>
    %cst_42 = arith.constant dense<0.000000e+00> : vector<8xf32>
    %103 = vector.multi_reduction <add>, %102, %cst_42 [1] : vector<8x32xf32> to vector<8xf32>
    %104 = vector.shape_cast %103 : vector<8xf32> to vector<8x1xf32>
    %cst_43 = arith.constant 3.200000e+01 : f32
    %105 = vector.broadcast %cst_43 : f32 to vector<8x1xf32>
    %106 = arith.divf %104, %105 : vector<8x1xf32>
    %cst_44 = arith.constant 9.99999996E-13 : f32
    %107 = vector.broadcast %cst_44 : f32 to vector<8x1xf32>
    %108 = arith.addf %106, %107 : vector<8x1xf32>
    %109 = math.rsqrt %108 : vector<8x1xf32>
    %110 = vector.broadcast %99 : vector<8x1xf32> to vector<8x32xf32>
    %111 = arith.subf %91, %110 : vector<8x32xf32>
    %112 = vector.broadcast %109 : vector<8x1xf32> to vector<8x32xf32>
    %113 = arith.mulf %111, %112 : vector<8x32xf32>
    %114 = vector.broadcast %93 : vector<1x32xf32> to vector<8x32xf32>
    %115 = arith.mulf %113, %114 : vector<8x32xf32>
    %116 = vector.broadcast %95 : vector<1x32xf32> to vector<8x32xf32>
    %117 = arith.addf %115, %116 : vector<8x32xf32>
    %c0_45 = arith.constant 0 : index
    %c0_46 = arith.constant 0 : index
    %c0_47 = arith.constant 0 : index
    %118 = vector.load %arg10[%c0_45, %c0_46, %c0_47] : memref<1x32x64xf32, #tpu.memory_space<vmem>>, vector<1x32x64xf32>
    %119 = vector.shape_cast %118 : vector<1x32x64xf32> to vector<32x64xf32>
    %cst_48 = arith.constant dense<0.000000e+00> : vector<8x64xf32>
    %120 = tpu.matmul %117, %119, %cst_48 {dimension_numbers = #tpu.dot_dimension_numbers<[1], [0], [0], [1], [0, 0, 1, 1], [], []>} : vector<8x32xf32>, vector<32x64xf32>, vector<8x64xf32> -> vector<8x64xf32>
    %c0_49 = arith.constant 0 : index
    %c0_50 = arith.constant 0 : index
    %c0_51 = arith.constant 0 : index
    %121 = vector.load %arg11[%c0_49, %c0_50, %c0_51] : memref<1x1x64xf32, #tpu.memory_space<vmem>>, vector<1x1x64xf32>
    %122 = vector.shape_cast %121 : vector<1x1x64xf32> to vector<1x64xf32>
    %123 = vector.broadcast %122 : vector<1x64xf32> to vector<8x64xf32>
    %124 = arith.addf %120, %123 : vector<8x64xf32>
    %cst_52 = arith.constant 5.000000e-01 : f32
    %125 = vector.broadcast %cst_52 : f32 to vector<8x64xf32>
    %126 = arith.mulf %125, %124 : vector<8x64xf32>
    %cst_53 = arith.constant 4.471500e-02 : f32
    %127 = vector.broadcast %cst_53 : f32 to vector<8x64xf32>
    %128 = arith.mulf %127, %124 : vector<8x64xf32>
    %129 = arith.mulf %128, %124 : vector<8x64xf32>
    %130 = arith.mulf %129, %124 : vector<8x64xf32>
    %131 = arith.addf %124, %130 : vector<8x64xf32>
    %cst_54 = arith.constant 0.797884583 : f32
    %132 = vector.broadcast %cst_54 : f32 to vector<8x64xf32>
    %133 = arith.mulf %132, %131 : vector<8x64xf32>
    %134 = math.tanh %133 : vector<8x64xf32>
    %cst_55 = arith.constant 1.000000e+00 : f32
    %135 = vector.broadcast %cst_55 : f32 to vector<8x64xf32>
    %136 = arith.addf %135, %134 : vector<8x64xf32>
    %137 = arith.mulf %126, %136 : vector<8x64xf32>
    %c0_56 = arith.constant 0 : index
    %c0_57 = arith.constant 0 : index
    %c0_58 = arith.constant 0 : index
    %138 = vector.load %arg12[%c0_56, %c0_57, %c0_58] : memref<1x64x32xf32, #tpu.memory_space<vmem>>, vector<1x64x32xf32>
    %139 = vector.shape_cast %138 : vector<1x64x32xf32> to vector<64x32xf32>
    %cst_59 = arith.constant dense<0.000000e+00> : vector<8x32xf32>
    %140 = tpu.matmul %137, %139, %cst_59 {dimension_numbers = #tpu.dot_dimension_numbers<[1], [0], [0], [1], [0, 0, 1, 1], [], []>} : vector<8x64xf32>, vector<64x32xf32>, vector<8x32xf32> -> vector<8x32xf32>
    %c0_60 = arith.constant 0 : index
    %c0_61 = arith.constant 0 : index
    %c0_62 = arith.constant 0 : index
    %141 = vector.load %arg13[%c0_60, %c0_61, %c0_62] : memref<1x1x32xf32, #tpu.memory_space<vmem>>, vector<1x1x32xf32>
    %142 = vector.shape_cast %141 : vector<1x1x32xf32> to vector<1x32xf32>
    %143 = vector.broadcast %142 : vector<1x32xf32> to vector<8x32xf32>
    %144 = arith.addf %140, %143 : vector<8x32xf32>
    %145 = arith.addf %117, %144 : vector<8x32xf32>
    %c0_63 = arith.constant 0 : index
    %c0_64 = arith.constant 0 : index
    %c0_65 = arith.constant 0 : index
    %146 = vector.load %arg14[%c0_63, %c0_64, %c0_65] : memref<1x1x32xf32, #tpu.memory_space<vmem>>, vector<1x1x32xf32>
    %147 = vector.shape_cast %146 : vector<1x1x32xf32> to vector<1x32xf32>
    %c0_66 = arith.constant 0 : index
    %c0_67 = arith.constant 0 : index
    %c0_68 = arith.constant 0 : index
    %148 = vector.load %arg15[%c0_66, %c0_67, %c0_68] : memref<1x1x32xf32, #tpu.memory_space<vmem>>, vector<1x1x32xf32>
    %149 = vector.shape_cast %148 : vector<1x1x32xf32> to vector<1x32xf32>
    %cst_69 = arith.constant dense<0.000000e+00> : vector<8xf32>
    %150 = vector.multi_reduction <add>, %145, %cst_69 [1] : vector<8x32xf32> to vector<8xf32>
    %151 = vector.shape_cast %150 : vector<8xf32> to vector<8x1xf32>
    %cst_70 = arith.constant 3.200000e+01 : f32
    %152 = vector.broadcast %cst_70 : f32 to vector<8x1xf32>
    %153 = arith.divf %151, %152 : vector<8x1xf32>
    %154 = vector.broadcast %153 : vector<8x1xf32> to vector<8x32xf32>
    %155 = arith.subf %145, %154 : vector<8x32xf32>
    %156 = arith.mulf %155, %155 : vector<8x32xf32>
    %cst_71 = arith.constant dense<0.000000e+00> : vector<8xf32>
    %157 = vector.multi_reduction <add>, %156, %cst_71 [1] : vector<8x32xf32> to vector<8xf32>
    %158 = vector.shape_cast %157 : vector<8xf32> to vector<8x1xf32>
    %cst_72 = arith.constant 3.200000e+01 : f32
    %159 = vector.broadcast %cst_72 : f32 to vector<8x1xf32>
    %160 = arith.divf %158, %159 : vector<8x1xf32>
    %cst_73 = arith.constant 9.99999996E-13 : f32
    %161 = vector.broadcast %cst_73 : f32 to vector<8x1xf32>
    %162 = arith.addf %160, %161 : vector<8x1xf32>
    %163 = math.rsqrt %162 : vector<8x1xf32>
    %164 = vector.broadcast %153 : vector<8x1xf32> to vector<8x32xf32>
    %165 = arith.subf %145, %164 : vector<8x32xf32>
    %166 = vector.broadcast %163 : vector<8x1xf32> to vector<8x32xf32>
    %167 = arith.mulf %165, %166 : vector<8x32xf32>
    %168 = vector.broadcast %147 : vector<1x32xf32> to vector<8x32xf32>
    %169 = arith.mulf %167, %168 : vector<8x32xf32>
    %170 = vector.broadcast %149 : vector<1x32xf32> to vector<8x32xf32>
    %171 = arith.addf %169, %170 : vector<8x32xf32>
    %c0_74 = arith.constant 0 : index
    %c0_75 = arith.constant 0 : index
    %172 = vector.load %arg17[%c0_74, %c0_75] : memref<8x32xf32, #tpu.memory_space<vmem>>, vector<8x32xf32>
    tpu.vector_store %arg17[%c0_74, %c0_75], %171 {strides = array<i32>} : memref<8x32xf32, #tpu.memory_space<vmem>>, vector<8x32xf32>,
    %c6_i32 = arith.constant 6 : i32
    %173 = arith.cmpi eq, %arg0, %c6_i32 : i32
    %174 = arith.extui %173 : i1 to i32
    %c0_i32_76 = arith.constant 0 : i32
    %175 = arith.cmpi ne, %174, %c0_i32_76 : i32
    scf.if %175 {
      %c0_78 = arith.constant 0 : index
      %c0_79 = arith.constant 0 : index
      %c0_80 = arith.constant 0 : index
      %179 = vector.load %arg16[%c0_78, %c0_79, %c0_80] : memref<2x8x32xf32, #tpu.memory_space<vmem>>, vector<1x8x32xf32>
      %180 = vector.shape_cast %179 : vector<1x8x32xf32> to vector<8x32xf32>
      %181 = vector.shape_cast %171 : vector<8x32xf32> to vector<1x8x32xf32>
      tpu.vector_store %arg16[%c0_78, %c0_79, %c0_80], %181 {strides = array<i32>} : memref<2x8x32xf32, #tpu.memory_space<vmem>>, vector<1x8x32xf32>,
    } else {
    }
    %c7_i32 = arith.constant 7 : i32
    %176 = arith.cmpi eq, %arg0, %c7_i32 : i32
    %177 = arith.extui %176 : i1 to i32
    %c0_i32_77 = arith.constant 0 : i32
    %178 = arith.cmpi ne, %177, %c0_i32_77 : i32
    scf.if %178 {
      %c1 = arith.constant 1 : index
      %c0_78 = arith.constant 0 : index
      %c0_79 = arith.constant 0 : index
      %179 = vector.load %arg16[%c1, %c0_78, %c0_79] : memref<2x8x32xf32, #tpu.memory_space<vmem>>, vector<1x8x32xf32>
      %180 = vector.shape_cast %179 : vector<1x8x32xf32> to vector<8x32xf32>
      %181 = vector.shape_cast %171 : vector<8x32xf32> to vector<1x8x32xf32>
      tpu.vector_store %arg16[%c1, %c0_78, %c0_79], %181 {strides = array<i32>} : memref<2x8x32xf32, #tpu.memory_space<vmem>>, vector<1x8x32xf32>,
    } else {
    }
    return
  }
  func.func @transform_0(%arg0: i32) -> (i32, i32) {
    %c0_i32 = arith.constant 0 : i32
    %c0_i32_0 = arith.constant 0 : i32
    %c0_i32_1 = arith.constant 0 : i32
    return %c0_i32, %c0_i32_0 : i32, i32
  }
  func.func @transform_1(%arg0: i32) -> (i32, i32) {
    %c0_i32 = arith.constant 0 : i32
    %c0_i32_0 = arith.constant 0 : i32
    %c0_i32_1 = arith.constant 0 : i32
    return %c0_i32, %c0_i32_0 : i32, i32
  }
  func.func @transform_2(%arg0: i32) -> (i32, i32) {
    %c0_i32 = arith.constant 0 : i32
    %c0_i32_0 = arith.constant 0 : i32
    %c0_i32_1 = arith.constant 0 : i32
    return %c0_i32, %c0_i32_0 : i32, i32
  }
  func.func @transform_3(%arg0: i32) -> (i32, i32, i32) {
    %c0_i32 = arith.constant 0 : i32
    %c0_i32_0 = arith.constant 0 : i32
    %c0_i32_1 = arith.constant 0 : i32
    return %arg0, %c0_i32, %c0_i32_0 : i32, i32, i32
  }
  func.func @transform_4(%arg0: i32) -> (i32, i32, i32) {
    %c0_i32 = arith.constant 0 : i32
    %c0_i32_0 = arith.constant 0 : i32
    %c0_i32_1 = arith.constant 0 : i32
    return %arg0, %c0_i32, %c0_i32_0 : i32, i32, i32
  }
  func.func @transform_5(%arg0: i32) -> (i32, i32, i32) {
    %c0_i32 = arith.constant 0 : i32
    %c0_i32_0 = arith.constant 0 : i32
    %c0_i32_1 = arith.constant 0 : i32
    return %arg0, %c0_i32, %c0_i32_0 : i32, i32, i32
  }
  func.func @transform_6(%arg0: i32) -> (i32, i32, i32) {
    %c0_i32 = arith.constant 0 : i32
    %c0_i32_0 = arith.constant 0 : i32
    %c0_i32_1 = arith.constant 0 : i32
    return %arg0, %c0_i32, %c0_i32_0 : i32, i32, i32
  }
  func.func @transform_7(%arg0: i32) -> (i32, i32, i32) {
    %c0_i32 = arith.constant 0 : i32
    %c0_i32_0 = arith.constant 0 : i32
    %c0_i32_1 = arith.constant 0 : i32
    return %arg0, %c0_i32, %c0_i32_0 : i32, i32, i32
  }
  func.func @transform_8(%arg0: i32) -> (i32, i32, i32) {
    %c0_i32 = arith.constant 0 : i32
    %c0_i32_0 = arith.constant 0 : i32
    %c0_i32_1 = arith.constant 0 : i32
    return %arg0, %c0_i32, %c0_i32_0 : i32, i32, i32
  }
  func.func @transform_9(%arg0: i32) -> (i32, i32, i32) {
    %c0_i32 = arith.constant 0 : i32
    %c0_i32_0 = arith.constant 0 : i32
    %c0_i32_1 = arith.constant 0 : i32
    return %arg0, %c0_i32, %c0_i32_0 : i32, i32, i32
  }
  func.func @transform_10(%arg0: i32) -> (i32, i32, i32) {
    %c0_i32 = arith.constant 0 : i32
    %c0_i32_0 = arith.constant 0 : i32
    %c0_i32_1 = arith.constant 0 : i32
    return %arg0, %c0_i32, %c0_i32_0 : i32, i32, i32
  }
  func.func @transform_11(%arg0: i32) -> (i32, i32, i32) {
    %c0_i32 = arith.constant 0 : i32
    %c0_i32_0 = arith.constant 0 : i32
    %c0_i32_1 = arith.constant 0 : i32
    return %arg0, %c0_i32, %c0_i32_0 : i32, i32, i32
  }
  func.func @transform_12(%arg0: i32) -> (i32, i32, i32) {
    %c0_i32 = arith.constant 0 : i32
    %c0_i32_0 = arith.constant 0 : i32
    %c0_i32_1 = arith.constant 0 : i32
    return %arg0, %c0_i32, %c0_i32_0 : i32, i32, i32
  }
  func.func @transform_13(%arg0: i32) -> (i32, i32, i32) {
    %c0_i32 = arith.constant 0 : i32
    %c0_i32_0 = arith.constant 0 : i32
    %c0_i32_1 = arith.constant 0 : i32
    return %arg0, %c0_i32, %c0_i32_0 : i32, i32, i32
  }
  func.func @transform_14(%arg0: i32) -> (i32, i32, i32) {
    %c0_i32 = arith.constant 0 : i32
    %c0_i32_0 = arith.constant 0 : i32
    %c0_i32_1 = arith.constant 0 : i32
    return %arg0, %c0_i32, %c0_i32_0 : i32, i32, i32
  }
  func.func @transform_15(%arg0: i32) -> (i32, i32, i32) {
    %c0_i32 = arith.constant 0 : i32
    %c0_i32_0 = arith.constant 0 : i32
    %c0_i32_1 = arith.constant 0 : i32
    %c0_i32_2 = arith.constant 0 : i32
    return %c0_i32, %c0_i32_0, %c0_i32_1 : i32, i32, i32
  }
}

</mosaic_0001>

<llo_original>
// kernel: roberta_forward.1
$region0: #{roberta_forward.1}
  #allocation0 [shape = 'u32[]', space=smem, size = 0x4, offset = 0x4, fixed_abs, tag = 'smem constant byte address 0x4 - core index']
  #allocation1 [shape = 'u32[144,128]{1,0:T(1,128)}', space=vmem, size = 0x12000, scoped, tag = 'internal scratch']
  #allocation2 [shape = 'f32[8,32]{1,0:T(8,128)}', space=vmem, size = 0x1000, scoped, tag = 'scratch operand']
  %s0 = inlined_call_operand.vmem [shape: f32[8,32], index: 0, kind: input, shape index: {}]
  %s1 = inlined_call_operand.vmem [shape: f32[1,32], index: 1, kind: input, shape index: {}]
  %s2 = inlined_call_operand.vmem [shape: f32[1,32], index: 2, kind: input, shape index: {}]
  %s3 = inlined_call_operand.vmem [shape: f32[8,32,96], index: 3, kind: input, shape index: {}]
  %s4 = inlined_call_operand.vmem [shape: f32[8,1,96], index: 4, kind: input, shape index: {}]
  %s5 = inlined_call_operand.vmem [shape: f32[8,32,32], index: 5, kind: input, shape index: {}]
  %s6 = inlined_call_operand.vmem [shape: f32[8,1,32], index: 6, kind: input, shape index: {}]
  %s7 = inlined_call_operand.vmem [shape: f32[8,1,32], index: 7, kind: input, shape index: {}]
  %s8 = inlined_call_operand.vmem [shape: f32[8,1,32], index: 8, kind: input, shape index: {}]
  %s9 = inlined_call_operand.vmem [shape: f32[8,32,64], index: 9, kind: input, shape index: {}]
  %s10 = inlined_call_operand.vmem [shape: f32[8,1,64], index: 10, kind: input, shape index: {}]
  %s11 = inlined_call_operand.vmem [shape: f32[8,64,32], index: 11, kind: input, shape index: {}]
  %s12 = inlined_call_operand.vmem [shape: f32[8,1,32], index: 12, kind: input, shape index: {}]
  %s13 = inlined_call_operand.vmem [shape: f32[8,1,32], index: 13, kind: input, shape index: {}]
  %s14 = inlined_call_operand.vmem [shape: f32[8,1,32], index: 14, kind: input, shape index: {}]
  %s15 = inlined_call_operand.vmem [shape: f32[2,8,32], index: 15, kind: output, shape index: {}]
  %s16 = sld [smem:[#allocation0]]
  $region105: #{roberta_forward.1} parent=0
    _
  %s18 = ssub.s32 1, %s16
  %s19 = scalar_select 0, %s18, %s16
  loop: start=0, step=1, limit=10
  $region2: #{roberta_forward.1} parent=0 // loop_pre_header
    _
  $region3: #{roberta_forward.1} parent=0 // loop_header
    %s21 = sphi 0, %s25
    %p22 = scmp.ge.s32.totalorder %s21, 10
    %s29 = sphi 0, %s29
    %s31 = sphi 0, %s29
    %s32 = sphi 0, %s31
    %s46 = sphi 0, %s32
    %s50 = sphi 0, %s50
    %s52 = sphi 0, %s50
    %s53 = sphi 0, %s52
    %s67 = sphi 0, %s53
    %s71 = sphi 0, %s71
    %s73 = sphi 0, %s71
    %s74 = sphi 0, %s73
    %s88 = sphi 0, %s74
    %s94 = sphi 0, %s96
    %s97 = sphi 0, %s94
    %s98 = sphi 0, %s97
    %s114 = sphi 0, %s98
    %s120 = sphi 0, %s122
    %s123 = sphi 0, %s120
    %s124 = sphi 0, %s123
    %s140 = sphi 0, %s124
    %s146 = sphi 0, %s148
    %s149 = sphi 0, %s146
    %s150 = sphi 0, %s149
    %s166 = sphi 0, %s150
    %s172 = sphi 0, %s174
    %s175 = sphi 0, %s172
    %s176 = sphi 0, %s175
    %s192 = sphi 0, %s176
    %s198 = sphi 0, %s200
    %s201 = sphi 0, %s198
    %s202 = sphi 0, %s201
    %s218 = sphi 0, %s202
    %s224 = sphi 0, %s226
    %s227 = sphi 0, %s224
    %s228 = sphi 0, %s227
    %s244 = sphi 0, %s228
    %s250 = sphi 0, %s252
    %s253 = sphi 0, %s250
    %s254 = sphi 0, %s253
    %s270 = sphi 0, %s254
    %s276 = sphi 0, %s278
    %s279 = sphi 0, %s276
    %s280 = sphi 0, %s279
    %s296 = sphi 0, %s280
    %s302 = sphi 0, %s304
    %s305 = sphi 0, %s302
    %s306 = sphi 0, %s305
    %s322 = sphi 0, %s306
    %s328 = sphi 0, %s330
    %s331 = sphi 0, %s328
    %s332 = sphi 0, %s331
    %s348 = sphi 0, %s332
    %s354 = sphi 0, %s356
    %s357 = sphi 0, %s354
    %s358 = sphi 0, %s357
    %s374 = sphi 0, %s358
    %s380 = sphi 0, %s382
    %s383 = sphi 0, %s380
    %s384 = sphi 0, %s383
    %s400 = sphi 0, %s384
    %s404 = sphi 0, %s404
    %s406 = sphi 0, %s404
    %s407 = sphi 0, %s406
    %s421 = sphi 0, %s407
  $region4: #{roberta_forward.1} parent=0 // loop_header_branch
    %24 = sbr.rel (%p22) target = $region8
  $region5: #{roberta_forward.1} parent=0 // loop_body
    %s26 = ssub.s32 %s21, 1
    %s27 = ssub.s32 %s21, 2
    %s28 = sadd.s32 %s21, 1
    %s30 = sadd.s32 %s29, 1
    %p33 = scmp.eq.s32.totalorder %s21, 7
    %p34 = scmp.ne.s32.totalorder %s29, %s31
    %p35 = scmp.eq.s32.totalorder %s21, 0
    %p36 = por %p34, %p35
    %p37 = scmp.ne.s32.totalorder %s29, %s31
    %p38 = scmp.eq.s32.totalorder %s26, 7
    %p39 = por %p37, %p38
    %p40 = scmp.ne.s32.totalorder %s31, %s32
    %p41 = scmp.eq.s32.totalorder %s26, 0
    %p42 = por %p40, %p41
    %p43 = scmp.ne.s32.totalorder %s31, %s32
    %p44 = scmp.eq.s32.totalorder %s27, 7
    %p45 = por %p43, %p44
    %p47 = scmp.ne.s32.totalorder %s32, %s46
    %p48 = scmp.eq.s32.totalorder %s27, 0
    %p49 = por %p47, %p48
    %s51 = sadd.s32 %s50, 1
    %p54 = scmp.eq.s32.totalorder %s21, 7
    %p55 = scmp.ne.s32.totalorder %s50, %s52
    %p56 = scmp.eq.s32.totalorder %s21, 0
    %p57 = por %p55, %p56
    %p58 = scmp.ne.s32.totalorder %s50, %s52
    %p59 = scmp.eq.s32.totalorder %s26, 7
    %p60 = por %p58, %p59
    %p61 = scmp.ne.s32.totalorder %s52, %s53
    %p62 = scmp.eq.s32.totalorder %s26, 0
    %p63 = por %p61, %p62
    %p64 = scmp.ne.s32.totalorder %s52, %s53
    %p65 = scmp.eq.s32.totalorder %s27, 7
    %p66 = por %p64, %p65
    %p68 = scmp.ne.s32.totalorder %s53, %s67
    %p69 = scmp.eq.s32.totalorder %s27, 0
    %p70 = por %p68, %p69
    %s72 = sadd.s32 %s71, 1
    %p75 = scmp.eq.s32.totalorder %s21, 7
    %p76 = scmp.ne.s32.totalorder %s71, %s73
    %p77 = scmp.eq.s32.totalorder %s21, 0
    %p78 = por %p76, %p77
    %p79 = scmp.ne.s32.totalorder %s71, %s73
    %p80 = scmp.eq.s32.totalorder %s26, 7
    %p81 = por %p79, %p80
    %p82 = scmp.ne.s32.totalorder %s73, %s74
    %p83 = scmp.eq.s32.totalorder %s26, 0
    %p84 = por %p82, %p83
    %p85 = scmp.ne.s32.totalorder %s73, %s74
    %p86 = scmp.eq.s32.totalorder %s27, 7
    %p87 = por %p85, %p86
    %p89 = scmp.ne.s32.totalorder %s74, %s88
    %p90 = scmp.eq.s32.totalorder %s27, 0
    %p91 = por %p89, %p90
    %s92 = ssub.s32 %s21, %s28
    %p93 = scmp.eq.s32.totalorder %s92, 0
    %s95 = sadd.s32 %s94, 1
    %s96 = scalar_select %p93, %s94, %s95
    %p99 = pneg %p93
    %p100 = scmp.eq.s32.totalorder %s21, 7
    %p101 = por %p99, %p100
    %p102 = scmp.ne.s32.totalorder %s94, %s97
    %p103 = scmp.eq.s32.totalorder %s21, 0
    %p104 = por %p102, %p103
    %p105 = scmp.ne.s32.totalorder %s94, %s97
    %p106 = scmp.eq.s32.totalorder %s26, 7
    %p107 = por %p105, %p106
    %p108 = scmp.ne.s32.totalorder %s97, %s98
    %p109 = scmp.eq.s32.totalorder %s26, 0
    %p110 = por %p108, %p109
    %p111 = scmp.ne.s32.totalorder %s97, %s98
    %p112 = scmp.eq.s32.totalorder %s27, 7
    %p113 = por %p111, %p112
    %p115 = scmp.ne.s32.totalorder %s98, %s114
    %p116 = scmp.eq.s32.totalorder %s27, 0
    %p117 = por %p115, %p116
    %s118 = ssub.s32 %s21, %s28
    %p119 = scmp.eq.s32.totalorder %s118, 0
    %s121 = sadd.s32 %s120, 1
    %s122 = scalar_select %p119, %s120, %s121
    %p125 = pneg %p119
    %p126 = scmp.eq.s32.totalorder %s21, 7
    %p127 = por %p125, %p126
    %p128 = scmp.ne.s32.totalorder %s120, %s123
    %p129 = scmp.eq.s32.totalorder %s21, 0
    %p130 = por %p128, %p129
    %p131 = scmp.ne.s32.totalorder %s120, %s123
    %p132 = scmp.eq.s32.totalorder %s26, 7
    %p133 = por %p131, %p132
    %p134 = scmp.ne.s32.totalorder %s123, %s124
    %p135 = scmp.eq.s32.totalorder %s26, 0
    %p136 = por %p134, %p135
    %p137 = scmp.ne.s32.totalorder %s123, %s124
    %p138 = scmp.eq.s32.totalorder %s27, 7
    %p139 = por %p137, %p138
    %p141 = scmp.ne.s32.totalorder %s124, %s140
    %p142 = scmp.eq.s32.totalorder %s27, 0
    %p143 = por %p141, %p142
    %s144 = ssub.s32 %s21, %s28
    %p145 = scmp.eq.s32.totalorder %s144, 0
    %s147 = sadd.s32 %s146, 1
    %s148 = scalar_select %p145, %s146, %s147
    %p151 = pneg %p145
    %p152 = scmp.eq.s32.totalorder %s21, 7
    %p153 = por %p151, %p152
    %p154 = scmp.ne.s32.totalorder %s146, %s149
    %p155 = scmp.eq.s32.totalorder %s21, 0
    %p156 = por %p154, %p155
    %p157 = scmp.ne.s32.totalorder %s146, %s149
    %p158 = scmp.eq.s32.totalorder %s26, 7
    %p159 = por %p157, %p158
    %p160 = scmp.ne.s32.totalorder %s149, %s150
    %p161 = scmp.eq.s32.totalorder %s26, 0
    %p162 = por %p160, %p161
    %p163 = scmp.ne.s32.totalorder %s149, %s150
    %p164 = scmp.eq.s32.totalorder %s27, 7
    %p165 = por %p163, %p164
    %p167 = scmp.ne.s32.totalorder %s150, %s166
    %p168 = scmp.eq.s32.totalorder %s27, 0
    %p169 = por %p167, %p168
    %s170 = ssub.s32 %s21, %s28
    %p171 = scmp.eq.s32.totalorder %s170, 0
    %s173 = sadd.s32 %s172, 1
    %s174 = scalar_select %p171, %s172, %s173
    %p177 = pneg %p171
    %p178 = scmp.eq.s32.totalorder %s21, 7
    %p179 = por %p177, %p178
    %p180 = scmp.ne.s32.totalorder %s172, %s175
    %p181 = scmp.eq.s32.totalorder %s21, 0
    %p182 = por %p180, %p181
    %p183 = scmp.ne.s32.totalorder %s172, %s175
    %p184 = scmp.eq.s32.totalorder %s26, 7
    %p185 = por %p183, %p184
    %p186 = scmp.ne.s32.totalorder %s175, %s176
    %p187 = scmp.eq.s32.totalorder %s26, 0
    %p188 = por %p186, %p187
    %p189 = scmp.ne.s32.totalorder %s175, %s176
    %p190 = scmp.eq.s32.totalorder %s27, 7
    %p191 = por %p189, %p190
    %p193 = scmp.ne.s32.totalorder %s176, %s192
    %p194 = scmp.eq.s32.totalorder %s27, 0
    %p195 = por %p193, %p194
    %s196 = ssub.s32 %s21, %s28
    %p197 = scmp.eq.s32.totalorder %s196, 0
    %s199 = sadd.s32 %s198, 1
    %s200 = scalar_select %p197, %s198, %s199
    %p203 = pneg %p197
    %p204 = scmp.eq.s32.totalorder %s21, 7
    %p205 = por %p203, %p204
    %p206 = scmp.ne.s32.totalorder %s198, %s201
    %p207 = scmp.eq.s32.totalorder %s21, 0
    %p208 = por %p206, %p207
    %p209 = scmp.ne.s32.totalorder %s198, %s201
    %p210 = scmp.eq.s32.totalorder %s26, 7
    %p211 = por %p209, %p210
    %p212 = scmp.ne.s32.totalorder %s201, %s202
    %p213 = scmp.eq.s32.totalorder %s26, 0
    %p214 = por %p212, %p213
    %p215 = scmp.ne.s32.totalorder %s201, %s202
    %p216 = scmp.eq.s32.totalorder %s27, 7
    %p217 = por %p215, %p216
    %p219 = scmp.ne.s32.totalorder %s202, %s218
    %p220 = scmp.eq.s32.totalorder %s27, 0
    %p221 = por %p219, %p220
    %s222 = ssub.s32 %s21, %s28
    %p223 = scmp.eq.s32.totalorder %s222, 0
    %s225 = sadd.s32 %s224, 1
    %s226 = scalar_select %p223, %s224, %s225
    %p229 = pneg %p223
    %p230 = scmp.eq.s32.totalorder %s21, 7
    %p231 = por %p229, %p230
    %p232 = scmp.ne.s32.totalorder %s224, %s227
    %p233 = scmp.eq.s32.totalorder %s21, 0
    %p234 = por %p232, %p233
    %p235 = scmp.ne.s32.totalorder %s224, %s227
    %p236 = scmp.eq.s32.totalorder %s26, 7
    %p237 = por %p235, %p236
    %p238 = scmp.ne.s32.totalorder %s227, %s228
    %p239 = scmp.eq.s32.totalorder %s26, 0
    %p240 = por %p238, %p239
    %p241 = scmp.ne.s32.totalorder %s227, %s228
    %p242 = scmp.eq.s32.totalorder %s27, 7
    %p243 = por %p241, %p242
    %p245 = scmp.ne.s32.totalorder %s228, %s244
    %p246 = scmp.eq.s32.totalorder %s27, 0
    %p247 = por %p245, %p246
    %s248 = ssub.s32 %s21, %s28
    %p249 = scmp.eq.s32.totalorder %s248, 0
    %s251 = sadd.s32 %s250, 1
    %s252 = scalar_select %p249, %s250, %s251
    %p255 = pneg %p249
    %p256 = scmp.eq.s32.totalorder %s21, 7
    %p257 = por %p255, %p256
    %p258 = scmp.ne.s32.totalorder %s250, %s253
    %p259 = scmp.eq.s32.totalorder %s21, 0
    %p260 = por %p258, %p259
    %p261 = scmp.ne.s32.totalorder %s250, %s253
    %p262 = scmp.eq.s32.totalorder %s26, 7
    %p263 = por %p261, %p262
    %p264 = scmp.ne.s32.totalorder %s253, %s254
    %p265 = scmp.eq.s32.totalorder %s26, 0
    %p266 = por %p264, %p265
    %p267 = scmp.ne.s32.totalorder %s253, %s254
    %p268 = scmp.eq.s32.totalorder %s27, 7
    %p269 = por %p267, %p268
    %p271 = scmp.ne.s32.totalorder %s254, %s270
    %p272 = scmp.eq.s32.totalorder %s27, 0
    %p273 = por %p271, %p272
    %s274 = ssub.s32 %s21, %s28
    %p275 = scmp.eq.s32.totalorder %s274, 0
    %s277 = sadd.s32 %s276, 1
    %s278 = scalar_select %p275, %s276, %s277
    %p281 = pneg %p275
    %p282 = scmp.eq.s32.totalorder %s21, 7
    %p283 = por %p281, %p282
    %p284 = scmp.ne.s32.totalorder %s276, %s279
    %p285 = scmp.eq.s32.totalorder %s21, 0
    %p286 = por %p284, %p285
    %p287 = scmp.ne.s32.totalorder %s276, %s279
    %p288 = scmp.eq.s32.totalorder %s26, 7
    %p289 = por %p287, %p288
    %p290 = scmp.ne.s32.totalorder %s279, %s280
    %p291 = scmp.eq.s32.totalorder %s26, 0
    %p292 = por %p290, %p291
    %p293 = scmp.ne.s32.totalorder %s279, %s280
    %p294 = scmp.eq.s32.totalorder %s27, 7
    %p295 = por %p293, %p294
    %p297 = scmp.ne.s32.totalorder %s280, %s296
    %p298 = scmp.eq.s32.totalorder %s27, 0
    %p299 = por %p297, %p298
    %s300 = ssub.s32 %s21, %s28
    %p301 = scmp.eq.s32.totalorder %s300, 0
    %s303 = sadd.s32 %s302, 1
    %s304 = scalar_select %p301, %s302, %s303
    %p307 = pneg %p301
    %p308 = scmp.eq.s32.totalorder %s21, 7
    %p309 = por %p307, %p308
    %p310 = scmp.ne.s32.totalorder %s302, %s305
    %p311 = scmp.eq.s32.totalorder %s21, 0
    %p312 = por %p310, %p311
    %p313 = scmp.ne.s32.totalorder %s302, %s305
    %p314 = scmp.eq.s32.totalorder %s26, 7
    %p315 = por %p313, %p314
    %p316 = scmp.ne.s32.totalorder %s305, %s306
    %p317 = scmp.eq.s32.totalorder %s26, 0
    %p318 = por %p316, %p317
    %p319 = scmp.ne.s32.totalorder %s305, %s306
    %p320 = scmp.eq.s32.totalorder %s27, 7
    %p321 = por %p319, %p320
    %p323 = scmp.ne.s32.totalorder %s306, %s322
    %p324 = scmp.eq.s32.totalorder %s27, 0
    %p325 = por %p323, %p324
    %s326 = ssub.s32 %s21, %s28
    %p327 = scmp.eq.s32.totalorder %s326, 0
    %s329 = sadd.s32 %s328, 1
    %s330 = scalar_select %p327, %s328, %s329
    %p333 = pneg %p327
    %p334 = scmp.eq.s32.totalorder %s21, 7
    %p335 = por %p333, %p334
    %p336 = scmp.ne.s32.totalorder %s328, %s331
    %p337 = scmp.eq.s32.totalorder %s21, 0
    %p338 = por %p336, %p337
    %p339 = scmp.ne.s32.totalorder %s328, %s331
    %p340 = scmp.eq.s32.totalorder %s26, 7
    %p341 = por %p339, %p340
    %p342 = scmp.ne.s32.totalorder %s331, %s332
    %p343 = scmp.eq.s32.totalorder %s26, 0
    %p344 = por %p342, %p343
    %p345 = scmp.ne.s32.totalorder %s331, %s332
    %p346 = scmp.eq.s32.totalorder %s27, 7
    %p347 = por %p345, %p346
    %p349 = scmp.ne.s32.totalorder %s332, %s348
    %p350 = scmp.eq.s32.totalorder %s27, 0
    %p351 = por %p349, %p350
    %s352 = ssub.s32 %s21, %s28
    %p353 = scmp.eq.s32.totalorder %s352, 0
    %s355 = sadd.s32 %s354, 1
    %s356 = scalar_select %p353, %s354, %s355
    %p359 = pneg %p353
    %p360 = scmp.eq.s32.totalorder %s21, 7
    %p361 = por %p359, %p360
    %p362 = scmp.ne.s32.totalorder %s354, %s357
    %p363 = scmp.eq.s32.totalorder %s21, 0
    %p364 = por %p362, %p363
    %p365 = scmp.ne.s32.totalorder %s354, %s357
    %p366 = scmp.eq.s32.totalorder %s26, 7
    %p367 = por %p365, %p366
    %p368 = scmp.ne.s32.totalorder %s357, %s358
    %p369 = scmp.eq.s32.totalorder %s26, 0
    %p370 = por %p368, %p369
    %p371 = scmp.ne.s32.totalorder %s357, %s358
    %p372 = scmp.eq.s32.totalorder %s27, 7
    %p373 = por %p371, %p372
    %p375 = scmp.ne.s32.totalorder %s358, %s374
    %p376 = scmp.eq.s32.totalorder %s27, 0
    %p377 = por %p375, %p376
    %s378 = ssub.s32 %s21, %s28
    %p379 = scmp.eq.s32.totalorder %s378, 0
    %s381 = sadd.s32 %s380, 1
    %s382 = scalar_select %p379, %s380, %s381
    %p385 = pneg %p379
    %p386 = scmp.eq.s32.totalorder %s21, 7
    %p387 = por %p385, %p386
    %p388 = scmp.ne.s32.totalorder %s380, %s383
    %p389 = scmp.eq.s32.totalorder %s21, 0
    %p390 = por %p388, %p389
    %p391 = scmp.ne.s32.totalorder %s380, %s383
    %p392 = scmp.eq.s32.totalorder %s26, 7
    %p393 = por %p391, %p392
    %p394 = scmp.ne.s32.totalorder %s383, %s384
    %p395 = scmp.eq.s32.totalorder %s26, 0
    %p396 = por %p394, %p395
    %p397 = scmp.ne.s32.totalorder %s383, %s384
    %p398 = scmp.eq.s32.totalorder %s27, 7
    %p399 = por %p397, %p398
    %p401 = scmp.ne.s32.totalorder %s384, %s400
    %p402 = scmp.eq.s32.totalorder %s27, 0
    %p403 = por %p401, %p402
    %s405 = sadd.s32 %s404, 1
    %p408 = scmp.eq.s32.totalorder %s21, 7
    %p409 = scmp.ne.s32.totalorder %s404, %s406
    %p410 = scmp.eq.s32.totalorder %s21, 0
    %p411 = por %p409, %p410
    %p412 = scmp.ne.s32.totalorder %s404, %s406
    %p413 = scmp.eq.s32.totalorder %s26, 7
    %p414 = por %p412, %p413
    %p415 = scmp.ne.s32.totalorder %s406, %s407
    %p416 = scmp.eq.s32.totalorder %s26, 0
    %p417 = por %p415, %p416
    %p418 = scmp.ne.s32.totalorder %s406, %s407
    %p419 = scmp.eq.s32.totalorder %s27, 7
    %p420 = por %p418, %p419
    %p422 = scmp.ne.s32.totalorder %s407, %s421
    %p423 = scmp.eq.s32.totalorder %s27, 0
    %p424 = por %p422, %p423
    %p425 = scmp.le.s32.totalorder 1, %s21
    %p426 = scmp.lt.s32.totalorder %s21, 9
    %p427 = pnand %p425, %p426
    %p428 = pneg %p427
    // Predicated region
    $region9: #{roberta_forward.1} parent=5 // pred_check
      _
    $region10: #{roberta_forward.1} parent=5 // pred_check_branch
      %430 = sbr.rel (%p427) target = $region12
    $region11: #{roberta_forward.1} parent=5 // pred_region
      %s431 = ssub.s32 %s21, 1
      // Predicated region
      $region13: #{roberta_forward.1} parent=11 // pred_check
        %p432 = pneg %p42
      $region14: #{roberta_forward.1} parent=11 // pred_check_branch
        %434 = sbr.rel (%p432) target = $region16
      $region15: #{roberta_forward.1} parent=11 // pred_region
        _
      $region16: #{roberta_forward.1} parent=11 // pred_fallthru
        _
      // Predicated region
      $region17: #{roberta_forward.1} parent=11 // pred_check
        %p435 = pneg %p63
      $region18: #{roberta_forward.1} parent=11 // pred_check_branch
        %437 = sbr.rel (%p435) target = $region20
      $region19: #{roberta_forward.1} parent=11 // pred_region
        _
      $region20: #{roberta_forward.1} parent=11 // pred_fallthru
        _
      // Predicated region
      $region21: #{roberta_forward.1} parent=11 // pred_check
        %p438 = pneg %p84
      $region22: #{roberta_forward.1} parent=11 // pred_check_branch
        %440 = sbr.rel (%p438) target = $region24
      $region23: #{roberta_forward.1} parent=11 // pred_region
        _
      $region24: #{roberta_forward.1} parent=11 // pred_fallthru
        _
    $region12: #{roberta_forward.1} parent=5 // pred_fallthru
      _
    %p441 = scmp.lt.s32.totalorder %s21, 8
    // Predicated region
    $region25: #{roberta_forward.1} parent=5 // pred_check
      %p442 = pneg %p441
    $region26: #{roberta_forward.1} parent=5 // pred_check_branch
      %444 = sbr.rel (%p442) target = $region28
    $region27: #{roberta_forward.1} parent=5 // pred_region
      // Predicated region
      $region29: #{roberta_forward.1} parent=27 // pred_check
        %p445 = pneg %p104
      $region30: #{roberta_forward.1} parent=27 // pred_check_branch
        %447 = sbr.rel (%p445) target = $region32
      $region31: #{roberta_forward.1} parent=27 // pred_region
        %p448 = scmp.lt.s32.totalorder %s21, 7
        %s449 = scalar_select %p448, %s21, 7
        %s450 = smul.addr %s449, 4
        %s451 = smul.addr %s450, 8
        %s452 = scalar_lea.vmem %s3, %s451
      $region32: #{roberta_forward.1} parent=27 // pred_fallthru
        _
      // Predicated region
      $region33: #{roberta_forward.1} parent=27 // pred_check
        %p453 = pneg %p130
      $region34: #{roberta_forward.1} parent=27 // pred_check_branch
        %455 = sbr.rel (%p453) target = $region36
      $region35: #{roberta_forward.1} parent=27 // pred_region
        %p456 = scmp.lt.s32.totalorder %s21, 7
        %s457 = scalar_select %p456, %s21, 7
        %s458 = scalar_lea.vmem %s4, %s457
      $region36: #{roberta_forward.1} parent=27 // pred_fallthru
        _
      // Predicated region
      $region37: #{roberta_forward.1} parent=27 // pred_check
        %p459 = pneg %p156
      $region38: #{roberta_forward.1} parent=27 // pred_check_branch
        %461 = sbr.rel (%p459) target = $region40
      $region39: #{roberta_forward.1} parent=27 // pred_region
        %p462 = scmp.lt.s32.totalorder %s21, 7
        %s463 = scalar_select %p462, %s21, 7
        %s464 = smul.addr %s463, 4
        %s465 = smul.addr %s464, 8
        %s466 = scalar_lea.vmem %s5, %s465
      $region40: #{roberta_forward.1} parent=27 // pred_fallthru
        _
      // Predicated region
      $region41: #{roberta_forward.1} parent=27 // pred_check
        %p467 = pneg %p182
      $region42: #{roberta_forward.1} parent=27 // pred_check_branch
        %469 = sbr.rel (%p467) target = $region44
      $region43: #{roberta_forward.1} parent=27 // pred_region
        %p470 = scmp.lt.s32.totalorder %s21, 7
        %s471 = scalar_select %p470, %s21, 7
        %s472 = scalar_lea.vmem %s6, %s471
      $region44: #{roberta_forward.1} parent=27 // pred_fallthru
        _
      // Predicated region
      $region45: #{roberta_forward.1} parent=27 // pred_check
        %p473 = pneg %p208
      $region46: #{roberta_forward.1} parent=27 // pred_check_branch
        %475 = sbr.rel (%p473) target = $region48
      $region47: #{roberta_forward.1} parent=27 // pred_region
        %p476 = scmp.lt.s32.totalorder %s21, 7
        %s477 = scalar_select %p476, %s21, 7
        %s478 = scalar_lea.vmem %s7, %s477
      $region48: #{roberta_forward.1} parent=27 // pred_fallthru
        _
      // Predicated region
      $region49: #{roberta_forward.1} parent=27 // pred_check
        %p479 = pneg %p234
      $region50: #{roberta_forward.1} parent=27 // pred_check_branch
        %481 = sbr.rel (%p479) target = $region52
      $region51: #{roberta_forward.1} parent=27 // pred_region
        %p482 = scmp.lt.s32.totalorder %s21, 7
        %s483 = scalar_select %p482, %s21, 7
        %s484 = scalar_lea.vmem %s8, %s483
      $region52: #{roberta_forward.1} parent=27 // pred_fallthru
        _
      // Predicated region
      $region53: #{roberta_forward.1} parent=27 // pred_check
        %p485 = pneg %p260
      $region54: #{roberta_forward.1} parent=27 // pred_check_branch
        %487 = sbr.rel (%p485) target = $region56
      $region55: #{roberta_forward.1} parent=27 // pred_region
        %p488 = scmp.lt.s32.totalorder %s21, 7
        %s489 = scalar_select %p488, %s21, 7
        %s490 = smul.addr %s489, 4
        %s491 = smul.addr %s490, 8
        %s492 = scalar_lea.vmem %s9, %s491
      $region56: #{roberta_forward.1} parent=27 // pred_fallthru
        _
      // Predicated region
      $region57: #{roberta_forward.1} parent=27 // pred_check
        %p493 = pneg %p286
      $region58: #{roberta_forward.1} parent=27 // pred_check_branch
        %495 = sbr.rel (%p493) target = $region60
      $region59: #{roberta_forward.1} parent=27 // pred_region
        %p496 = scmp.lt.s32.totalorder %s21, 7
        %s497 = scalar_select %p496, %s21, 7
        %s498 = scalar_lea.vmem %s10, %s497
      $region60: #{roberta_forward.1} parent=27 // pred_fallthru
        _
      // Predicated region
      $region61: #{roberta_forward.1} parent=27 // pred_check
        %p499 = pneg %p312
      $region62: #{roberta_forward.1} parent=27 // pred_check_branch
        %501 = sbr.rel (%p499) target = $region64
      $region63: #{roberta_forward.1} parent=27 // pred_region
        %p502 = scmp.lt.s32.totalorder %s21, 7
        %s503 = scalar_select %p502, %s21, 7
        %s504 = smul.addr %s503, 8
        %s505 = smul.addr %s504, 8
        %s506 = scalar_lea.vmem %s11, %s505
      $region64: #{roberta_forward.1} parent=27 // pred_fallthru
        _
      // Predicated region
      $region65: #{roberta_forward.1} parent=27 // pred_check
        %p507 = pneg %p338
      $region66: #{roberta_forward.1} parent=27 // pred_check_branch
        %509 = sbr.rel (%p507) target = $region68
      $region67: #{roberta_forward.1} parent=27 // pred_region
        %p510 = scmp.lt.s32.totalorder %s21, 7
        %s511 = scalar_select %p510, %s21, 7
        %s512 = scalar_lea.vmem %s12, %s511
      $region68: #{roberta_forward.1} parent=27 // pred_fallthru
        _
      // Predicated region
      $region69: #{roberta_forward.1} parent=27 // pred_check
        %p513 = pneg %p364
      $region70: #{roberta_forward.1} parent=27 // pred_check_branch
        %515 = sbr.rel (%p513) target = $region72
      $region71: #{roberta_forward.1} parent=27 // pred_region
        %p516 = scmp.lt.s32.totalorder %s21, 7
        %s517 = scalar_select %p516, %s21, 7
        %s518 = scalar_lea.vmem %s13, %s517
      $region72: #{roberta_forward.1} parent=27 // pred_fallthru
        _
      // Predicated region
      $region73: #{roberta_forward.1} parent=27 // pred_check
        %p519 = pneg %p390
      $region74: #{roberta_forward.1} parent=27 // pred_check_branch
        %521 = sbr.rel (%p519) target = $region76
      $region75: #{roberta_forward.1} parent=27 // pred_region
        %p522 = scmp.lt.s32.totalorder %s21, 7
        %s523 = scalar_select %p522, %s21, 7
        %s524 = scalar_lea.vmem %s14, %s523
      $region76: #{roberta_forward.1} parent=27 // pred_fallthru
        _
    $region28: #{roberta_forward.1} parent=5 // pred_fallthru
      _
    %p525 = scmp.le.s32.totalorder 1, %s21
    %p526 = scmp.lt.s32.totalorder %s21, 9
    %p527 = pnand %p525, %p526
    %p528 = pneg %p527
    // Predicated region
    $region77: #{roberta_forward.1} parent=5 // pred_check
      _
    $region78: #{roberta_forward.1} parent=5 // pred_check_branch
      %530 = sbr.rel (%p527) target = $region80
    $region79: #{roberta_forward.1} parent=5 // pred_region
      %s531 = ssub.s32 %s21, 1
      %p532 = pneg %p42
      %p533 = pneg %p39
      %p534 = pneg %p63
      %p535 = pneg %p60
      %p536 = pneg %p84
      %p537 = pneg %p81
      %p538 = scmp.lt.s32.totalorder %s26, 7
      %s539 = scalar_select %p538, %s26, 7
      %s540 = smul.addr %s539, 4
      %s541 = smul.addr %s540, 8
      %s542 = scalar_lea.vmem %s3, %s541
      %p543 = pneg %p110
      %p544 = pneg %p107
      %p545 = scmp.lt.s32.totalorder %s26, 7
      %s546 = scalar_select %p545, %s26, 7
      %s547 = scalar_lea.vmem %s4, %s546
      %p548 = pneg %p136
      %p549 = pneg %p133
      %p550 = scmp.lt.s32.totalorder %s26, 7
      %s551 = scalar_select %p550, %s26, 7
      %s552 = smul.addr %s551, 4
      %s553 = smul.addr %s552, 8
      %s554 = scalar_lea.vmem %s5, %s553
      %p555 = pneg %p162
      %p556 = pneg %p159
      %p557 = scmp.lt.s32.totalorder %s26, 7
      %s558 = scalar_select %p557, %s26, 7
      %s559 = scalar_lea.vmem %s6, %s558
      %p560 = pneg %p188
      %p561 = pneg %p185
      %p562 = scmp.lt.s32.totalorder %s26, 7
      %s563 = scalar_select %p562, %s26, 7
      %s564 = scalar_lea.vmem %s7, %s563
      %p565 = pneg %p214
      %p566 = pneg %p211
      %p567 = scmp.lt.s32.totalorder %s26, 7
      %s568 = scalar_select %p567, %s26, 7
      %s569 = scalar_lea.vmem %s8, %s568
      %p570 = pneg %p240
      %p571 = pneg %p237
      %p572 = scmp.lt.s32.totalorder %s26, 7
      %s573 = scalar_select %p572, %s26, 7
      %s574 = smul.addr %s573, 4
      %s575 = smul.addr %s574, 8
      %s576 = scalar_lea.vmem %s9, %s575
      %p577 = pneg %p266
      %p578 = pneg %p263
      %p579 = scmp.lt.s32.totalorder %s26, 7
      %s580 = scalar_select %p579, %s26, 7
      %s581 = scalar_lea.vmem %s10, %s580
      %p582 = pneg %p292
      %p583 = pneg %p289
      %p584 = scmp.lt.s32.totalorder %s26, 7
      %s585 = scalar_select %p584, %s26, 7
      %s586 = smul.addr %s585, 8
      %s587 = smul.addr %s586, 8
      %s588 = scalar_lea.vmem %s11, %s587
      %p589 = pneg %p318
      %p590 = pneg %p315
      %p591 = scmp.lt.s32.totalorder %s26, 7
      %s592 = scalar_select %p591, %s26, 7
      %s593 = scalar_lea.vmem %s12, %s592
      %p594 = pneg %p344
      %p595 = pneg %p341
      %p596 = scmp.lt.s32.totalorder %s26, 7
      %s597 = scalar_select %p596, %s26, 7
      %s598 = scalar_lea.vmem %s13, %s597
      %p599 = pneg %p370
      %p600 = pneg %p367
      %p601 = scmp.lt.s32.totalorder %s26, 7
      %s602 = scalar_select %p601, %s26, 7
      %s603 = scalar_lea.vmem %s14, %s602
      %p604 = pneg %p396
      %p605 = pneg %p393
      %p606 = pneg %p417
      %p607 = pneg %p414
      %p608 = scmp.lt.s32.totalorder %s26, 7
      %s609 = scalar_select %p608, %s26, 7
      %s610 = smul.addr %s609, 4
      %s611 = smul.addr %s610, 8
      %s612 = scalar_lea.vmem %s3, %s611
      %p613 = scmp.lt.s32.totalorder %s26, 7
      %s614 = scalar_select %p613, %s26, 7
      %s615 = scalar_lea.vmem %s4, %s614
      %p616 = scmp.lt.s32.totalorder %s26, 7
      %s617 = scalar_select %p616, %s26, 7
      %s618 = smul.addr %s617, 4
      %s619 = smul.addr %s618, 8
      %s620 = scalar_lea.vmem %s5, %s619
      %p621 = scmp.lt.s32.totalorder %s26, 7
      %s622 = scalar_select %p621, %s26, 7
      %s623 = scalar_lea.vmem %s6, %s622
      %p624 = scmp.lt.s32.totalorder %s26, 7
      %s625 = scalar_select %p624, %s26, 7
      %s626 = scalar_lea.vmem %s7, %s625
      %p627 = scmp.lt.s32.totalorder %s26, 7
      %s628 = scalar_select %p627, %s26, 7
      %s629 = scalar_lea.vmem %s8, %s628
      %p630 = scmp.lt.s32.totalorder %s26, 7
      %s631 = scalar_select %p630, %s26, 7
      %s632 = smul.addr %s631, 4
      %s633 = smul.addr %s632, 8
      %s634 = scalar_lea.vmem %s9, %s633
      %p635 = scmp.lt.s32.totalorder %s26, 7
      %s636 = scalar_select %p635, %s26, 7
      %s637 = scalar_lea.vmem %s10, %s636
      %p638 = scmp.lt.s32.totalorder %s26, 7
      %s639 = scalar_select %p638, %s26, 7
      %s640 = smul.addr %s639, 8
      %s641 = smul.addr %s640, 8
      %s642 = scalar_lea.vmem %s11, %s641
      %p643 = scmp.lt.s32.totalorder %s26, 7
      %s644 = scalar_select %p643, %s26, 7
      %s645 = scalar_lea.vmem %s12, %s644
      %p646 = scmp.lt.s32.totalorder %s26, 7
      %s647 = scalar_select %p646, %s26, 7
      %s648 = scalar_lea.vmem %s13, %s647
      %p649 = scmp.lt.s32.totalorder %s26, 7
      %s650 = scalar_select %p649, %s26, 7
      %s651 = scalar_lea.vmem %s14, %s650
      %p652 = scmp.eq.s32.totalorder %s26, 0
      // Predicated region
      $region81: #{roberta_forward.1} parent=79 // pred_check
        %p653 = pneg %p652
      $region82: #{roberta_forward.1} parent=79 // pred_check_branch
        %655 = sbr.rel (%p653) target = $region84
      $region83: #{roberta_forward.1} parent=79 // pred_region
        %v656 = vld [vmem:[%s0] sm:$0xff]
        %v657 = vld [vmem:[%s1] sm:$0x1]
        %v658 = vld [vmem:[%s2] sm:$0x1]
        %vm659 = vcmask 261120
        %v660 = vsel %vm659, %v656, 0.0
        %661 = vadd.xlane.f32.xlu0 %v660
        %v662 = vpop.xlane.xlu0 %661
        %v663 = vrcp.pop 32.0
        %v664 = vmul.f32 %v662, %v663
        %v665 = vsub.f32 %v656, %v664
        %v666 = vmul.f32 %v665, %v665
        %v667 = vsel %vm659, %v666, 0.0
        %668 = vadd.xlane.f32.xlu0 %v667
        %v669 = vpop.xlane.xlu0 %668
        %v670 = vmul.f32 %v669, %v663
        %v671 = vadd.f32 %v670, 1e-12
        %v672 = vrsqrt.pop %v671
        %v673 = vmul.f32 %v665, %v672
        %v675 = vlaneseq
        %v676 = vshrl.u32 %v675, 7
        %v677 = vsub.s32 0, %v676
        %v678 = vrot.slane %v657, %v677
        %v680 = vmul.f32 %v673, %v678
        %v682 = vlaneseq
        %v683 = vshrl.u32 %v682, 7
        %v684 = vsub.s32 0, %v683
        %v685 = vrot.slane %v658, %v684
        %v687 = vadd.f32 %v680, %v685
        %688 = vst.msk [vmem:[#allocation2] sm:$0xff] %vm659, %v687
      $region84: #{roberta_forward.1} parent=79 // pred_fallthru
        _
      %v689 = vld [vmem:[#allocation2] sm:$0xff]
      %v690 = vld [vmem:[%s612] sm:$0xff]
      %v691 = vld [vmem:[%s612 + $0x8] sm:$0xff]
      %v692 = vld [vmem:[%s612 + $0x10] sm:$0xff]
      %v693 = vld [vmem:[%s612 + $0x18] sm:$0xff]
      %v694 = vld [vmem:[%s615] sm:$0x1]
      %v696 = vlaneseq
      %v697 = vshrl.u32 %v696, 7
      %v698 = vsub.s32 0, %v697
      %v699 = vrot.slane %v694, %v698
      %vm701 = vcmask 261120
      %v703 = vsel %vm701, %v689, 0
      %705 = vmatprep.subr.mxu0 0.0
      %706 = vmatpush1.msra.mxu0 %v690
      %707 = vmatprep.subr.mxu0 0.0
      %708 = vmatpush1.msra.mxu0 %v691
      %709 = vmatprep.subr.mxu0 0.0
      %710 = vmatpush1.msra.mxu0 %v692
      %711 = vmatprep.subr.mxu0 0.0
      %712 = vmatpush1.msra.mxu0 %v693
      %713 = vmatprep.subr.mxu0 0.0
      %714 = vmatpush1.msra.mxu0 0.0
      %715 = vmatprep.subr.mxu0 0.0
      %716 = vmatpush1.msra.mxu0 0.0
      %717 = vmatprep.subr.mxu0 0.0
      %718 = vmatpush1.msra.mxu0 0.0
      %719 = vmatprep.subr.mxu0 0.0
      %720 = vmatpush1.msra.mxu0 0.0
      %721 = vmatprep.subr.mxu0 0.0
      %722 = vmatpush1.msra.mxu0 0.0
      %723 = vmatprep.subr.mxu0 0.0
      %724 = vmatpush1.msra.mxu0 0.0
      %725 = vmatprep.subr.mxu0 0.0
      %726 = vmatpush1.msra.mxu0 0.0
      %727 = vmatprep.subr.mxu0 0.0
      %728 = vmatpush1.msra.mxu0 0.0
      %729 = vmatprep.subr.mxu0 0.0
      %730 = vmatpush1.msra.mxu0 0.0
      %731 = vmatprep.subr.mxu0 0.0
      %732 = vmatpush1.msra.mxu0 0.0
      %733 = vmatprep.subr.mxu0 0.0
      %734 = vmatpush1.msra.mxu0 0.0
      %735 = vmatprep.subr.mxu0 0.0
      %736 = vmatpush1.msra.mxu0 0.0
      %737 = vmatprep.subr.mxu0 0.0
      %738 = vmatpush1.msra.mxu0 0.0
      %739 = vmatprep.subr.mxu0 0.0
      %740 = vmatpush1.msra.mxu0 0.0
      %741 = vmatprep.subr.mxu0 0.0
      %742 = vmatpush1.msra.mxu0 0.0
      %743 = vmatprep.subr.mxu0 0.0
      %744 = vmatpush1.msra.mxu0 0.0
      %745 = vmatprep.subr.mxu0 0.0
      %746 = vmatpush1.msra.mxu0 0.0
      %747 = vmatprep.subr.mxu0 0.0
      %748 = vmatpush1.msra.mxu0 0.0
      %749 = vmatprep.subr.mxu0 0.0
      %750 = vmatpush1.msra.mxu0 0.0
      %751 = vmatprep.subr.mxu0 0.0
      %752 = vmatpush1.msra.mxu0 0.0
      %753 = vmatprep.subr.mxu0 0.0
      %754 = vmatpush1.msra.mxu0 0.0
      %755 = vmatprep.subr.mxu0 0.0
      %756 = vmatpush1.msra.mxu0 0.0
      %757 = vmatprep.subr.mxu0 0.0
      %758 = vmatpush1.msra.mxu0 0.0
      %759 = vmatprep.subr.mxu0 0.0
      %760 = vmatpush1.msra.mxu0 0.0
      %761 = vmatprep.subr.mxu0 0.0
      %762 = vmatpush1.msra.mxu0 0.0
      %763 = vmatprep.subr.mxu0 0.0
      %764 = vmatpush1.msra.mxu0 0.0
      %765 = vmatprep.subr.mxu0 0.0
      %766 = vmatpush1.msra.mxu0 0.0
      %767 = vmatprep.subr.mxu0 0.0
      %768 = vmatpush1.msra.mxu0 0.0
      %769 = vmatprep.mubr.f32.mxu0 0.0
      %770 = vmatmul.mubr.f32.gmra.mrb[0].mxu0 %v703
      %v771 = vpop.f32.mrb[0].mxu0
      %v772 = vadd.f32 %v699, %v771
      %v773 = vpop.f32.mrb[0].mxu0
      %774 = vdwg.mxu0
      %v775 = vld [vmem:[%s620] sm:$0xff]
      %v776 = vld [vmem:[%s620 + $0x8] sm:$0xff]
      %v777 = vld [vmem:[%s620 + $0x10] sm:$0xff]
      %v778 = vld [vmem:[%s620 + $0x18] sm:$0xff]
      %v779 = vld [vmem:[%s623] sm:$0x1]
      %781 = vrot.lane.b32.xlu0 %v772, 96
      %v782 = vpop.permute.xlu0 %781
      %vm783 = vcmask 64512
      %v784 = vsel %vm783, %v772, 0
      %v786 = vsel %vm783, %v782, 0
      %788 = vmatprep.subr.mxu0 0.0
      %789 = vmatpush1.xpose.msra.mxu0 %v786
      %790 = vmatprep.subr.mxu0 0.0
      %791 = vmatpush1.xpose.msra.mxu0 0.0
      %792 = vmatprep.subr.mxu0 0.0
      %793 = vmatpush1.xpose.msra.mxu0 0.0
      %794 = vmatprep.subr.mxu0 0.0
      %795 = vmatpush1.xpose.msra.mxu0 0.0
      %796 = vmatprep.subr.mxu0 0.0
      %797 = vmatpush1.xpose.msra.mxu0 0.0
      %798 = vmatprep.subr.mxu0 0.0
      %799 = vmatpush1.xpose.msra.mxu0 0.0
      %800 = vmatprep.subr.mxu0 0.0
      %801 = vmatpush1.xpose.msra.mxu0 0.0
      %802 = vmatprep.subr.mxu0 0.0
      %803 = vmatpush1.xpose.msra.mxu0 0.0
      %804 = vmatprep.subr.mxu0 0.0
      %805 = vmatpush1.xpose.msra.mxu0 0.0
      %806 = vmatprep.subr.mxu0 0.0
      %807 = vmatpush1.xpose.msra.mxu0 0.0
      %808 = vmatprep.subr.mxu0 0.0
      %809 = vmatpush1.xpose.msra.mxu0 0.0
      %810 = vmatprep.subr.mxu0 0.0
      %811 = vmatpush1.xpose.msra.mxu0 0.0
      %812 = vmatprep.subr.mxu0 0.0
      %813 = vmatpush1.xpose.msra.mxu0 0.0
      %814 = vmatprep.subr.mxu0 0.0
      %815 = vmatpush1.xpose.msra.mxu0 0.0
      %816 = vmatprep.subr.mxu0 0.0
      %817 = vmatpush1.xpose.msra.mxu0 0.0
      %818 = vmatprep.subr.mxu0 0.0
      %819 = vmatpush1.xpose.msra.mxu0 0.0
      %820 = vmatprep.subr.mxu0 0.0
      %821 = vmatpush1.xpose.msra.mxu0 0.0
      %822 = vmatprep.subr.mxu0 0.0
      %823 = vmatpush1.xpose.msra.mxu0 0.0
      %824 = vmatprep.subr.mxu0 0.0
      %825 = vmatpush1.xpose.msra.mxu0 0.0
      %826 = vmatprep.subr.mxu0 0.0
      %827 = vmatpush1.xpose.msra.mxu0 0.0
      %828 = vmatprep.subr.mxu0 0.0
      %829 = vmatpush1.xpose.msra.mxu0 0.0
      %830 = vmatprep.subr.mxu0 0.0
      %831 = vmatpush1.xpose.msra.mxu0 0.0
      %832 = vmatprep.subr.mxu0 0.0
      %833 = vmatpush1.xpose.msra.mxu0 0.0
      %834 = vmatprep.subr.mxu0 0.0
      %835 = vmatpush1.xpose.msra.mxu0 0.0
      %836 = vmatprep.subr.mxu0 0.0
      %837 = vmatpush1.xpose.msra.mxu0 0.0
      %838 = vmatprep.subr.mxu0 0.0
      %839 = vmatpush1.xpose.msra.mxu0 0.0
      %840 = vmatprep.subr.mxu0 0.0
      %841 = vmatpush1.xpose.msra.mxu0 0.0
      %842 = vmatprep.subr.mxu0 0.0
      %843 = vmatpush1.xpose.msra.mxu0 0.0
      %844 = vmatprep.subr.mxu0 0.0
      %845 = vmatpush1.xpose.msra.mxu0 0.0
      %846 = vmatprep.subr.mxu0 0.0
      %847 = vmatpush1.xpose.msra.mxu0 0.0
      %848 = vmatprep.subr.mxu0 0.0
      %849 = vmatpush1.xpose.msra.mxu0 0.0
      %850 = vmatprep.subr.mxu0 0.0
      %851 = vmatpush1.xpose.msra.mxu0 0.0
      %852 = vmatprep.mubr.f32.mxu0 0.0
      %853 = vmatmul.mubr.f32.gmra.mrb[0].mxu0 %v784
      %v854 = vpop.f32.mrb[0].mxu0
      %v855 = vadd.f32 0.0, %v854
      %v856 = vpop.f32.mrb[0].mxu0
      %857 = vdwg.mxu0
      %v858 = vsel %vm783, %v855, -inf
      %859 = vmax.xlane.f32.xlu0 %v858
      %v860 = vpop.xlane.xlu0 %859
      %v861 = vsub.f32 %v855, %v860
      %v862 = vmul.f32 %v861, 1.442695
      %v863 = vpow.pop %v862
      %v864 = vsel %vm783, %v863, 0.0
      %865 = vadd.xlane.f32.xlu0 %v864
      %v866 = vpop.xlane.xlu0 %865
      %v867 = vrcp.pop %v866
      %v868 = vmul.f32 %v863, %v867
      %869 = vrot.lane.b32.xlu0 %v772, 64
      %v870 = vpop.permute.xlu0 %869
      %v873 = vsel %vm783, %v868, 0
      %875 = vmatprep.subr.mxu0 0.0
      %876 = vmatpush1.msra.mxu0 %v870
      %877 = vmatprep.subr.mxu0 0.0
      %878 = vmatpush1.msra.mxu0 0.0
      %879 = vmatprep.subr.mxu0 0.0
      %880 = vmatpush1.msra.mxu0 0.0
      %881 = vmatprep.subr.mxu0 0.0
      %882 = vmatpush1.msra.mxu0 0.0
      %883 = vmatprep.subr.mxu0 0.0
      %884 = vmatpush1.msra.mxu0 0.0
      %885 = vmatprep.subr.mxu0 0.0
      %886 = vmatpush1.msra.mxu0 0.0
      %887 = vmatprep.subr.mxu0 0.0
      %888 = vmatpush1.msra.mxu0 0.0
      %889 = vmatprep.subr.mxu0 0.0
      %890 = vmatpush1.msra.mxu0 0.0
      %891 = vmatprep.subr.mxu0 0.0
      %892 = vmatpush1.msra.mxu0 0.0
      %893 = vmatprep.subr.mxu0 0.0
      %894 = vmatpush1.msra.mxu0 0.0
      %895 = vmatprep.subr.mxu0 0.0
      %896 = vmatpush1.msra.mxu0 0.0
      %897 = vmatprep.subr.mxu0 0.0
      %898 = vmatpush1.msra.mxu0 0.0
      %899 = vmatprep.subr.mxu0 0.0
      %900 = vmatpush1.msra.mxu0 0.0
      %901 = vmatprep.subr.mxu0 0.0
      %902 = vmatpush1.msra.mxu0 0.0
      %903 = vmatprep.subr.mxu0 0.0
      %904 = vmatpush1.msra.mxu0 0.0
      %905 = vmatprep.subr.mxu0 0.0
      %906 = vmatpush1.msra.mxu0 0.0
      %907 = vmatprep.subr.mxu0 0.0
      %908 = vmatpush1.msra.mxu0 0.0
      %909 = vmatprep.subr.mxu0 0.0
      %910 = vmatpush1.msra.mxu0 0.0
      %911 = vmatprep.subr.mxu0 0.0
      %912 = vmatpush1.msra.mxu0 0.0
      %913 = vmatprep.subr.mxu0 0.0
      %914 = vmatpush1.msra.mxu0 0.0
      %915 = vmatprep.subr.mxu0 0.0
      %916 = vmatpush1.msra.mxu0 0.0
      %917 = vmatprep.subr.mxu0 0.0
      %918 = vmatpush1.msra.mxu0 0.0
      %919 = vmatprep.subr.mxu0 0.0
      %920 = vmatpush1.msra.mxu0 0.0
      %921 = vmatprep.subr.mxu0 0.0
      %922 = vmatpush1.msra.mxu0 0.0
      %923 = vmatprep.subr.mxu0 0.0
      %924 = vmatpush1.msra.mxu0 0.0
      %925 = vmatprep.subr.mxu0 0.0
      %926 = vmatpush1.msra.mxu0 0.0
      %927 = vmatprep.subr.mxu0 0.0
      %928 = vmatpush1.msra.mxu0 0.0
      %929 = vmatprep.subr.mxu0 0.0
      %930 = vmatpush1.msra.mxu0 0.0
      %931 = vmatprep.subr.mxu0 0.0
      %932 = vmatpush1.msra.mxu0 0.0
      %933 = vmatprep.subr.mxu0 0.0
      %934 = vmatpush1.msra.mxu0 0.0
      %935 = vmatprep.subr.mxu0 0.0
      %936 = vmatpush1.msra.mxu0 0.0
      %937 = vmatprep.subr.mxu0 0.0
      %938 = vmatpush1.msra.mxu0 0.0
      %939 = vmatprep.mubr.f32.mxu0 0.0
      %940 = vmatmul.mubr.f32.gmra.mrb[0].mxu0 %v873
      %v941 = vpop.f32.mrb[0].mxu0
      %v942 = vadd.f32 0.0, %v941
      %v943 = vpop.f32.mrb[0].mxu0
      %944 = vdwg.mxu0
      %v946 = vsel %vm783, %v942, 0
      %948 = vmatprep.subr.mxu0 0.0
      %949 = vmatpush1.msra.mxu0 %v775
      %950 = vmatprep.subr.mxu0 0.0
      %951 = vmatpush1.msra.mxu0 0.0
      %952 = vmatprep.subr.mxu0 0.0
      %953 = vmatpush1.msra.mxu0 0.0
      %954 = vmatprep.subr.mxu0 0.0
      %955 = vmatpush1.msra.mxu0 0.0
      %956 = vmatprep.subr.mxu0 0.0
      %957 = vmatpush1.msra.mxu0 0.0
      %958 = vmatprep.subr.mxu0 0.0
      %959 = vmatpush1.msra.mxu0 0.0
      %960 = vmatprep.subr.mxu0 0.0
      %961 = vmatpush1.msra.mxu0 0.0
      %962 = vmatprep.subr.mxu0 0.0
      %963 = vmatpush1.msra.mxu0 0.0
      %964 = vmatprep.subr.mxu0 0.0
      %965 = vmatpush1.msra.mxu0 0.0
      %966 = vmatprep.subr.mxu0 0.0
      %967 = vmatpush1.msra.mxu0 0.0
      %968 = vmatprep.subr.mxu0 0.0
      %969 = vmatpush1.msra.mxu0 0.0
      %970 = vmatprep.subr.mxu0 0.0
      %971 = vmatpush1.msra.mxu0 0.0
      %972 = vmatprep.subr.mxu0 0.0
      %973 = vmatpush1.msra.mxu0 0.0
      %974 = vmatprep.subr.mxu0 0.0
      %975 = vmatpush1.msra.mxu0 0.0
      %976 = vmatprep.subr.mxu0 0.0
      %977 = vmatpush1.msra.mxu0 0.0
      %978 = vmatprep.subr.mxu0 0.0
      %979 = vmatpush1.msra.mxu0 0.0
      %980 = vmatprep.subr.mxu0 0.0
      %981 = vmatpush1.msra.mxu0 0.0
      %982 = vmatprep.subr.mxu0 0.0
      %983 = vmatpush1.msra.mxu0 0.0
      %984 = vmatprep.subr.mxu0 0.0
      %985 = vmatpush1.msra.mxu0 0.0
      %986 = vmatprep.subr.mxu0 0.0
      %987 = vmatpush1.msra.mxu0 0.0
      %988 = vmatprep.subr.mxu0 0.0
      %989 = vmatpush1.msra.mxu0 0.0
      %990 = vmatprep.subr.mxu0 0.0
      %991 = vmatpush1.msra.mxu0 0.0
      %992 = vmatprep.subr.mxu0 0.0
      %993 = vmatpush1.msra.mxu0 0.0
      %994 = vmatprep.subr.mxu0 0.0
      %995 = vmatpush1.msra.mxu0 0.0
      %996 = vmatprep.subr.mxu0 0.0
      %997 = vmatpush1.msra.mxu0 0.0
      %998 = vmatprep.subr.mxu0 0.0
      %999 = vmatpush1.msra.mxu0 0.0
      %1000 = vmatprep.subr.mxu0 0.0
      %1001 = vmatpush1.msra.mxu0 0.0
      %1002 = vmatprep.subr.mxu0 0.0
      %1003 = vmatpush1.msra.mxu0 0.0
      %1004 = vmatprep.subr.mxu0 0.0
      %1005 = vmatpush1.msra.mxu0 0.0
      %1006 = vmatprep.subr.mxu0 0.0
      %1007 = vmatpush1.msra.mxu0 0.0
      %1008 = vmatprep.subr.mxu0 0.0
      %1009 = vmatpush1.msra.mxu0 0.0
      %1010 = vmatprep.subr.mxu0 0.0
      %1011 = vmatpush1.msra.mxu0 0.0
      %1012 = vmatprep.mubr.f32.mxu0 0.0
      %1013 = vmatmul.mubr.f32.gmra.mrb[0].mxu0 %v946
      %v1014 = vpop.f32.mrb[0].mxu0
      %v1015 = vadd.f32 0.0, %v1014
      %v1016 = vpop.f32.mrb[0].mxu0
      %1017 = vdwg.mxu0
      %v1019 = vlaneseq
      %v1020 = vshrl.u32 %v1019, 7
      %v1021 = vsub.s32 0, %v1020
      %v1022 = vrot.slane %v779, %v1021
      %v1024 = vadd.f32 %v1022, %v1015
      %1025 = vrot.lane.b32.xlu0 %v772, 120
      %v1026 = vpop.permute.xlu0 %1025
      %1027 = vrot.lane.b32.xlu0 %v772, 88
      %v1028 = vpop.permute.xlu0 %1027
      %v1029 = vsel %vm783, %v1026, 0
      %v1031 = vsel %vm783, %v1028, 0
      %1033 = vmatprep.subr.mxu0 0.0
      %1034 = vmatpush1.xpose.msra.mxu0 %v1031
      %1035 = vmatprep.subr.mxu0 0.0
      %1036 = vmatpush1.xpose.msra.mxu0 0.0
      %1037 = vmatprep.subr.mxu0 0.0
      %1038 = vmatpush1.xpose.msra.mxu0 0.0
      %1039 = vmatprep.subr.mxu0 0.0
      %1040 = vmatpush1.xpose.msra.mxu0 0.0
      %1041 = vmatprep.subr.mxu0 0.0
      %1042 = vmatpush1.xpose.msra.mxu0 0.0
      %1043 = vmatprep.subr.mxu0 0.0
      %1044 = vmatpush1.xpose.msra.mxu0 0.0
      %1045 = vmatprep.subr.mxu0 0.0
      %1046 = vmatpush1.xpose.msra.mxu0 0.0
      %1047 = vmatprep.subr.mxu0 0.0
      %1048 = vmatpush1.xpose.msra.mxu0 0.0
      %1049 = vmatprep.subr.mxu0 0.0
      %1050 = vmatpush1.xpose.msra.mxu0 0.0
      %1051 = vmatprep.subr.mxu0 0.0
      %1052 = vmatpush1.xpose.msra.mxu0 0.0
      %1053 = vmatprep.subr.mxu0 0.0
      %1054 = vmatpush1.xpose.msra.mxu0 0.0
      %1055 = vmatprep.subr.mxu0 0.0
      %1056 = vmatpush1.xpose.msra.mxu0 0.0
      %1057 = vmatprep.subr.mxu0 0.0
      %1058 = vmatpush1.xpose.msra.mxu0 0.0
      %1059 = vmatprep.subr.mxu0 0.0
      %1060 = vmatpush1.xpose.msra.mxu0 0.0
      %1061 = vmatprep.subr.mxu0 0.0
      %1062 = vmatpush1.xpose.msra.mxu0 0.0
      %1063 = vmatprep.subr.mxu0 0.0
      %1064 = vmatpush1.xpose.msra.mxu0 0.0
      %1065 = vmatprep.subr.mxu0 0.0
      %1066 = vmatpush1.xpose.msra.mxu0 0.0
      %1067 = vmatprep.subr.mxu0 0.0
      %1068 = vmatpush1.xpose.msra.mxu0 0.0
      %1069 = vmatprep.subr.mxu0 0.0
      %1070 = vmatpush1.xpose.msra.mxu0 0.0
      %1071 = vmatprep.subr.mxu0 0.0
      %1072 = vmatpush1.xpose.msra.mxu0 0.0
      %1073 = vmatprep.subr.mxu0 0.0
      %1074 = vmatpush1.xpose.msra.mxu0 0.0
      %1075 = vmatprep.subr.mxu0 0.0
      %1076 = vmatpush1.xpose.msra.mxu0 0.0
      %1077 = vmatprep.subr.mxu0 0.0
      %1078 = vmatpush1.xpose.msra.mxu0 0.0
      %1079 = vmatprep.subr.mxu0 0.0
      %1080 = vmatpush1.xpose.msra.mxu0 0.0
      %1081 = vmatprep.subr.mxu0 0.0
      %1082 = vmatpush1.xpose.msra.mxu0 0.0
      %1083 = vmatprep.subr.mxu0 0.0
      %1084 = vmatpush1.xpose.msra.mxu0 0.0
      %1085 = vmatprep.subr.mxu0 0.0
      %1086 = vmatpush1.xpose.msra.mxu0 0.0
      %1087 = vmatprep.subr.mxu0 0.0
      %1088 = vmatpush1.xpose.msra.mxu0 0.0
      %1089 = vmatprep.subr.mxu0 0.0
      %1090 = vmatpush1.xpose.msra.mxu0 0.0
      %1091 = vmatprep.subr.mxu0 0.0
      %1092 = vmatpush1.xpose.msra.mxu0 0.0
      %1093 = vmatprep.subr.mxu0 0.0
      %1094 = vmatpush1.xpose.msra.mxu0 0.0
      %1095 = vmatprep.subr.mxu0 0.0
      %1096 = vmatpush1.xpose.msra.mxu0 0.0
      %1097 = vmatprep.mubr.f32.mxu0 0.0
      %1098 = vmatmul.mubr.f32.gmra.mrb[0].mxu0 %v1029
      %v1099 = vpop.f32.mrb[0].mxu0
      %v1100 = vadd.f32 0.0, %v1099
      %v1101 = vpop.f32.mrb[0].mxu0
      %1102 = vdwg.mxu0
      %v1103 = vsel %vm783, %v1100, -inf
      %1104 = vmax.xlane.f32.xlu0 %v1103
      %v1105 = vpop.xlane.xlu0 %1104
      %v1106 = vsub.f32 %v1100, %v1105
      %v1107 = vmul.f32 %v1106, 1.442695
      %v1108 = vpow.pop %v1107
      %v1109 = vsel %vm783, %v1108, 0.0
      %1110 = vadd.xlane.f32.xlu0 %v1109
      %v1111 = vpop.xlane.xlu0 %1110
      %v1112 = vrcp.pop %v1111
      %v1113 = vmul.f32 %v1108, %v1112
      %1114 = vrot.lane.b32.xlu0 %v772, 56
      %v1115 = vpop.permute.xlu0 %1114
      %v1118 = vsel %vm783, %v1113, 0
      %1120 = vmatprep.subr.mxu0 0.0
      %1121 = vmatpush1.msra.mxu0 %v1115
      %1122 = vmatprep.subr.mxu0 0.0
      %1123 = vmatpush1.msra.mxu0 0.0
      %1124 = vmatprep.subr.mxu0 0.0
      %1125 = vmatpush1.msra.mxu0 0.0
      %1126 = vmatprep.subr.mxu0 0.0
      %1127 = vmatpush1.msra.mxu0 0.0
      %1128 = vmatprep.subr.mxu0 0.0
      %1129 = vmatpush1.msra.mxu0 0.0
      %1130 = vmatprep.subr.mxu0 0.0
      %1131 = vmatpush1.msra.mxu0 0.0
      %1132 = vmatprep.subr.mxu0 0.0
      %1133 = vmatpush1.msra.mxu0 0.0
      %1134 = vmatprep.subr.mxu0 0.0
      %1135 = vmatpush1.msra.mxu0 0.0
      %1136 = vmatprep.subr.mxu0 0.0
      %1137 = vmatpush1.msra.mxu0 0.0
      %1138 = vmatprep.subr.mxu0 0.0
      %1139 = vmatpush1.msra.mxu0 0.0
      %1140 = vmatprep.subr.mxu0 0.0
      %1141 = vmatpush1.msra.mxu0 0.0
      %1142 = vmatprep.subr.mxu0 0.0
      %1143 = vmatpush1.msra.mxu0 0.0
      %1144 = vmatprep.subr.mxu0 0.0
      %1145 = vmatpush1.msra.mxu0 0.0
      %1146 = vmatprep.subr.mxu0 0.0
      %1147 = vmatpush1.msra.mxu0 0.0
      %1148 = vmatprep.subr.mxu0 0.0
      %1149 = vmatpush1.msra.mxu0 0.0
      %1150 = vmatprep.subr.mxu0 0.0
      %1151 = vmatpush1.msra.mxu0 0.0
      %1152 = vmatprep.subr.mxu0 0.0
      %1153 = vmatpush1.msra.mxu0 0.0
      %1154 = vmatprep.subr.mxu0 0.0
      %1155 = vmatpush1.msra.mxu0 0.0
      %1156 = vmatprep.subr.mxu0 0.0
      %1157 = vmatpush1.msra.mxu0 0.0
      %1158 = vmatprep.subr.mxu0 0.0
      %1159 = vmatpush1.msra.mxu0 0.0
      %1160 = vmatprep.subr.mxu0 0.0
      %1161 = vmatpush1.msra.mxu0 0.0
      %1162 = vmatprep.subr.mxu0 0.0
      %1163 = vmatpush1.msra.mxu0 0.0
      %1164 = vmatprep.subr.mxu0 0.0
      %1165 = vmatpush1.msra.mxu0 0.0
      %1166 = vmatprep.subr.mxu0 0.0
      %1167 = vmatpush1.msra.mxu0 0.0
      %1168 = vmatprep.subr.mxu0 0.0
      %1169 = vmatpush1.msra.mxu0 0.0
      %1170 = vmatprep.subr.mxu0 0.0
      %1171 = vmatpush1.msra.mxu0 0.0
      %1172 = vmatprep.subr.mxu0 0.0
      %1173 = vmatpush1.msra.mxu0 0.0
      %1174 = vmatprep.subr.mxu0 0.0
      %1175 = vmatpush1.msra.mxu0 0.0
      %1176 = vmatprep.subr.mxu0 0.0
      %1177 = vmatpush1.msra.mxu0 0.0
      %1178 = vmatprep.subr.mxu0 0.0
      %1179 = vmatpush1.msra.mxu0 0.0
      %1180 = vmatprep.subr.mxu0 0.0
      %1181 = vmatpush1.msra.mxu0 0.0
      %1182 = vmatprep.subr.mxu0 0.0
      %1183 = vmatpush1.msra.mxu0 0.0
      %1184 = vmatprep.mubr.f32.mxu0 0.0
      %1185 = vmatmul.mubr.f32.gmra.mrb[0].mxu0 %v1118
      %v1186 = vpop.f32.mrb[0].mxu0
      %v1187 = vadd.f32 0.0, %v1186
      %v1188 = vpop.f32.mrb[0].mxu0
      %1189 = vdwg.mxu0
      %v1191 = vsel %vm783, %v1187, 0
      %1193 = vmatprep.subr.mxu0 0.0
      %1194 = vmatpush1.msra.mxu0 %v776
      %1195 = vmatprep.subr.mxu0 0.0
      %1196 = vmatpush1.msra.mxu0 0.0
      %1197 = vmatprep.subr.mxu0 0.0
      %1198 = vmatpush1.msra.mxu0 0.0
      %1199 = vmatprep.subr.mxu0 0.0
      %1200 = vmatpush1.msra.mxu0 0.0
      %1201 = vmatprep.subr.mxu0 0.0
      %1202 = vmatpush1.msra.mxu0 0.0
      %1203 = vmatprep.subr.mxu0 0.0
      %1204 = vmatpush1.msra.mxu0 0.0
      %1205 = vmatprep.subr.mxu0 0.0
      %1206 = vmatpush1.msra.mxu0 0.0
      %1207 = vmatprep.subr.mxu0 0.0
      %1208 = vmatpush1.msra.mxu0 0.0
      %1209 = vmatprep.subr.mxu0 0.0
      %1210 = vmatpush1.msra.mxu0 0.0
      %1211 = vmatprep.subr.mxu0 0.0
      %1212 = vmatpush1.msra.mxu0 0.0
      %1213 = vmatprep.subr.mxu0 0.0
      %1214 = vmatpush1.msra.mxu0 0.0
      %1215 = vmatprep.subr.mxu0 0.0
      %1216 = vmatpush1.msra.mxu0 0.0
      %1217 = vmatprep.subr.mxu0 0.0
      %1218 = vmatpush1.msra.mxu0 0.0
      %1219 = vmatprep.subr.mxu0 0.0
      %1220 = vmatpush1.msra.mxu0 0.0
      %1221 = vmatprep.subr.mxu0 0.0
      %1222 = vmatpush1.msra.mxu0 0.0
      %1223 = vmatprep.subr.mxu0 0.0
      %1224 = vmatpush1.msra.mxu0 0.0
      %1225 = vmatprep.subr.mxu0 0.0
      %1226 = vmatpush1.msra.mxu0 0.0
      %1227 = vmatprep.subr.mxu0 0.0
      %1228 = vmatpush1.msra.mxu0 0.0
      %1229 = vmatprep.subr.mxu0 0.0
      %1230 = vmatpush1.msra.mxu0 0.0
      %1231 = vmatprep.subr.mxu0 0.0
      %1232 = vmatpush1.msra.mxu0 0.0
      %1233 = vmatprep.subr.mxu0 0.0
      %1234 = vmatpush1.msra.mxu0 0.0
      %1235 = vmatprep.subr.mxu0 0.0
      %1236 = vmatpush1.msra.mxu0 0.0
      %1237 = vmatprep.subr.mxu0 0.0
      %1238 = vmatpush1.msra.mxu0 0.0
      %1239 = vmatprep.subr.mxu0 0.0
      %1240 = vmatpush1.msra.mxu0 0.0
      %1241 = vmatprep.subr.mxu0 0.0
      %1242 = vmatpush1.msra.mxu0 0.0
      %1243 = vmatprep.subr.mxu0 0.0
      %1244 = vmatpush1.msra.mxu0 0.0
      %1245 = vmatprep.subr.mxu0 0.0
      %1246 = vmatpush1.msra.mxu0 0.0
      %1247 = vmatprep.subr.mxu0 0.0
      %1248 = vmatpush1.msra.mxu0 0.0
      %1249 = vmatprep.subr.mxu0 0.0
      %1250 = vmatpush1.msra.mxu0 0.0
      %1251 = vmatprep.subr.mxu0 0.0
      %1252 = vmatpush1.msra.mxu0 0.0
      %1253 = vmatprep.subr.mxu0 0.0
      %1254 = vmatpush1.msra.mxu0 0.0
      %1255 = vmatprep.subr.mxu0 0.0
      %1256 = vmatpush1.msra.mxu0 0.0
      %1257 = vmatprep.mubr.f32.mxu0 0.0
      %1258 = vmatmul.mubr.f32.gmra.mrb[0].mxu0 %v1191
      %v1259 = vpop.f32.mrb[0].mxu0
      %v1260 = vadd.f32 0.0, %v1259
      %v1261 = vpop.f32.mrb[0].mxu0
      %1262 = vdwg.mxu0
      %v1263 = vadd.f32 %v1024, %v1260
      %1264 = vrot.lane.b32.xlu0 %v772, 112
      %v1265 = vpop.permute.xlu0 %1264
      %1266 = vrot.lane.b32.xlu0 %v772, 80
      %v1267 = vpop.permute.xlu0 %1266
      %v1268 = vsel %vm783, %v1265, 0
      %v1270 = vsel %vm783, %v1267, 0
      %1272 = vmatprep.subr.mxu0 0.0
      %1273 = vmatpush1.xpose.msra.mxu0 %v1270
      %1274 = vmatprep.subr.mxu0 0.0
      %1275 = vmatpush1.xpose.msra.mxu0 0.0
      %1276 = vmatprep.subr.mxu0 0.0
      %1277 = vmatpush1.xpose.msra.mxu0 0.0
      %1278 = vmatprep.subr.mxu0 0.0
      %1279 = vmatpush1.xpose.msra.mxu0 0.0
      %1280 = vmatprep.subr.mxu0 0.0
      %1281 = vmatpush1.xpose.msra.mxu0 0.0
      %1282 = vmatprep.subr.mxu0 0.0
      %1283 = vmatpush1.xpose.msra.mxu0 0.0
      %1284 = vmatprep.subr.mxu0 0.0
      %1285 = vmatpush1.xpose.msra.mxu0 0.0
      %1286 = vmatprep.subr.mxu0 0.0
      %1287 = vmatpush1.xpose.msra.mxu0 0.0
      %1288 = vmatprep.subr.mxu0 0.0
      %1289 = vmatpush1.xpose.msra.mxu0 0.0
      %1290 = vmatprep.subr.mxu0 0.0
      %1291 = vmatpush1.xpose.msra.mxu0 0.0
      %1292 = vmatprep.subr.mxu0 0.0
      %1293 = vmatpush1.xpose.msra.mxu0 0.0
      %1294 = vmatprep.subr.mxu0 0.0
      %1295 = vmatpush1.xpose.msra.mxu0 0.0
      %1296 = vmatprep.subr.mxu0 0.0
      %1297 = vmatpush1.xpose.msra.mxu0 0.0
      %1298 = vmatprep.subr.mxu0 0.0
      %1299 = vmatpush1.xpose.msra.mxu0 0.0
      %1300 = vmatprep.subr.mxu0 0.0
      %1301 = vmatpush1.xpose.msra.mxu0 0.0
      %1302 = vmatprep.subr.mxu0 0.0
      %1303 = vmatpush1.xpose.msra.mxu0 0.0
      %1304 = vmatprep.subr.mxu0 0.0
      %1305 = vmatpush1.xpose.msra.mxu0 0.0
      %1306 = vmatprep.subr.mxu0 0.0
      %1307 = vmatpush1.xpose.msra.mxu0 0.0
      %1308 = vmatprep.subr.mxu0 0.0
      %1309 = vmatpush1.xpose.msra.mxu0 0.0
      %1310 = vmatprep.subr.mxu0 0.0
      %1311 = vmatpush1.xpose.msra.mxu0 0.0
      %1312 = vmatprep.subr.mxu0 0.0
      %1313 = vmatpush1.xpose.msra.mxu0 0.0
      %1314 = vmatprep.subr.mxu0 0.0
      %1315 = vmatpush1.xpose.msra.mxu0 0.0
      %1316 = vmatprep.subr.mxu0 0.0
      %1317 = vmatpush1.xpose.msra.mxu0 0.0
      %1318 = vmatprep.subr.mxu0 0.0
      %1319 = vmatpush1.xpose.msra.mxu0 0.0
      %1320 = vmatprep.subr.mxu0 0.0
      %1321 = vmatpush1.xpose.msra.mxu0 0.0
      %1322 = vmatprep.subr.mxu0 0.0
      %1323 = vmatpush1.xpose.msra.mxu0 0.0
      %1324 = vmatprep.subr.mxu0 0.0
      %1325 = vmatpush1.xpose.msra.mxu0 0.0
      %1326 = vmatprep.subr.mxu0 0.0
      %1327 = vmatpush1.xpose.msra.mxu0 0.0
      %1328 = vmatprep.subr.mxu0 0.0
      %1329 = vmatpush1.xpose.msra.mxu0 0.0
      %1330 = vmatprep.subr.mxu0 0.0
      %1331 = vmatpush1.xpose.msra.mxu0 0.0
      %1332 = vmatprep.subr.mxu0 0.0
      %1333 = vmatpush1.xpose.msra.mxu0 0.0
      %1334 = vmatprep.subr.mxu0 0.0
      %1335 = vmatpush1.xpose.msra.mxu0 0.0
      %1336 = vmatprep.mubr.f32.mxu0 0.0
      %1337 = vmatmul.mubr.f32.gmra.mrb[0].mxu0 %v1268
      %v1338 = vpop.f32.mrb[0].mxu0
      %v1339 = vadd.f32 0.0, %v1338
      %v1340 = vpop.f32.mrb[0].mxu0
      %1341 = vdwg.mxu0
      %v1342 = vsel %vm783, %v1339, -inf
      %1343 = vmax.xlane.f32.xlu0 %v1342
      %v1344 = vpop.xlane.xlu0 %1343
      %v1345 = vsub.f32 %v1339, %v1344
      %v1346 = vmul.f32 %v1345, 1.442695
      %v1347 = vpow.pop %v1346
      %v1348 = vsel %vm783, %v1347, 0.0
      %1349 = vadd.xlane.f32.xlu0 %v1348
      %v1350 = vpop.xlane.xlu0 %1349
      %v1351 = vrcp.pop %v1350
      %v1352 = vmul.f32 %v1347, %v1351
      %1353 = vrot.lane.b32.xlu0 %v772, 48
      %v1354 = vpop.permute.xlu0 %1353
      %v1357 = vsel %vm783, %v1352, 0
      %1359 = vmatprep.subr.mxu0 0.0
      %1360 = vmatpush1.msra.mxu0 %v1354
      %1361 = vmatprep.subr.mxu0 0.0
      %1362 = vmatpush1.msra.mxu0 0.0
      %1363 = vmatprep.subr.mxu0 0.0
      %1364 = vmatpush1.msra.mxu0 0.0
      %1365 = vmatprep.subr.mxu0 0.0
      %1366 = vmatpush1.msra.mxu0 0.0
      %1367 = vmatprep.subr.mxu0 0.0
      %1368 = vmatpush1.msra.mxu0 0.0
      %1369 = vmatprep.subr.mxu0 0.0
      %1370 = vmatpush1.msra.mxu0 0.0
      %1371 = vmatprep.subr.mxu0 0.0
      %1372 = vmatpush1.msra.mxu0 0.0
      %1373 = vmatprep.subr.mxu0 0.0
      %1374 = vmatpush1.msra.mxu0 0.0
      %1375 = vmatprep.subr.mxu0 0.0
      %1376 = vmatpush1.msra.mxu0 0.0
      %1377 = vmatprep.subr.mxu0 0.0
      %1378 = vmatpush1.msra.mxu0 0.0
      %1379 = vmatprep.subr.mxu0 0.0
      %1380 = vmatpush1.msra.mxu0 0.0
      %1381 = vmatprep.subr.mxu0 0.0
      %1382 = vmatpush1.msra.mxu0 0.0
      %1383 = vmatprep.subr.mxu0 0.0
      %1384 = vmatpush1.msra.mxu0 0.0
      %1385 = vmatprep.subr.mxu0 0.0
      %1386 = vmatpush1.msra.mxu0 0.0
      %1387 = vmatprep.subr.mxu0 0.0
      %1388 = vmatpush1.msra.mxu0 0.0
      %1389 = vmatprep.subr.mxu0 0.0
      %1390 = vmatpush1.msra.mxu0 0.0
      %1391 = vmatprep.subr.mxu0 0.0
      %1392 = vmatpush1.msra.mxu0 0.0
      %1393 = vmatprep.subr.mxu0 0.0
      %1394 = vmatpush1.msra.mxu0 0.0
      %1395 = vmatprep.subr.mxu0 0.0
      %1396 = vmatpush1.msra.mxu0 0.0
      %1397 = vmatprep.subr.mxu0 0.0
      %1398 = vmatpush1.msra.mxu0 0.0
      %1399 = vmatprep.subr.mxu0 0.0
      %1400 = vmatpush1.msra.mxu0 0.0
      %1401 = vmatprep.subr.mxu0 0.0
      %1402 = vmatpush1.msra.mxu0 0.0
      %1403 = vmatprep.subr.mxu0 0.0
      %1404 = vmatpush1.msra.mxu0 0.0
      %1405 = vmatprep.subr.mxu0 0.0
      %1406 = vmatpush1.msra.mxu0 0.0
      %1407 = vmatprep.subr.mxu0 0.0
      %1408 = vmatpush1.msra.mxu0 0.0
      %1409 = vmatprep.subr.mxu0 0.0
      %1410 = vmatpush1.msra.mxu0 0.0
      %1411 = vmatprep.subr.mxu0 0.0
      %1412 = vmatpush1.msra.mxu0 0.0
      %1413 = vmatprep.subr.mxu0 0.0
      %1414 = vmatpush1.msra.mxu0 0.0
      %1415 = vmatprep.subr.mxu0 0.0
      %1416 = vmatpush1.msra.mxu0 0.0
      %1417 = vmatprep.subr.mxu0 0.0
      %1418 = vmatpush1.msra.mxu0 0.0
      %1419 = vmatprep.subr.mxu0 0.0
      %1420 = vmatpush1.msra.mxu0 0.0
      %1421 = vmatprep.subr.mxu0 0.0
      %1422 = vmatpush1.msra.mxu0 0.0
      %1423 = vmatprep.mubr.f32.mxu0 0.0
      %1424 = vmatmul.mubr.f32.gmra.mrb[0].mxu0 %v1357
      %v1425 = vpop.f32.mrb[0].mxu0
      %v1426 = vadd.f32 0.0, %v1425
      %v1427 = vpop.f32.mrb[0].mxu0
      %1428 = vdwg.mxu0
      %v1430 = vsel %vm783, %v1426, 0
      %1432 = vmatprep.subr.mxu0 0.0
      %1433 = vmatpush1.msra.mxu0 %v777
      %1434 = vmatprep.subr.mxu0 0.0
      %1435 = vmatpush1.msra.mxu0 0.0
      %1436 = vmatprep.subr.mxu0 0.0
      %1437 = vmatpush1.msra.mxu0 0.0
      %1438 = vmatprep.subr.mxu0 0.0
      %1439 = vmatpush1.msra.mxu0 0.0
      %1440 = vmatprep.subr.mxu0 0.0
      %1441 = vmatpush1.msra.mxu0 0.0
      %1442 = vmatprep.subr.mxu0 0.0
      %1443 = vmatpush1.msra.mxu0 0.0
      %1444 = vmatprep.subr.mxu0 0.0
      %1445 = vmatpush1.msra.mxu0 0.0
      %1446 = vmatprep.subr.mxu0 0.0
      %1447 = vmatpush1.msra.mxu0 0.0
      %1448 = vmatprep.subr.mxu0 0.0
      %1449 = vmatpush1.msra.mxu0 0.0
      %1450 = vmatprep.subr.mxu0 0.0
      %1451 = vmatpush1.msra.mxu0 0.0
      %1452 = vmatprep.subr.mxu0 0.0
      %1453 = vmatpush1.msra.mxu0 0.0
      %1454 = vmatprep.subr.mxu0 0.0
      %1455 = vmatpush1.msra.mxu0 0.0
      %1456 = vmatprep.subr.mxu0 0.0
      %1457 = vmatpush1.msra.mxu0 0.0
      %1458 = vmatprep.subr.mxu0 0.0
      %1459 = vmatpush1.msra.mxu0 0.0
      %1460 = vmatprep.subr.mxu0 0.0
      %1461 = vmatpush1.msra.mxu0 0.0
      %1462 = vmatprep.subr.mxu0 0.0
      %1463 = vmatpush1.msra.mxu0 0.0
      %1464 = vmatprep.subr.mxu0 0.0
      %1465 = vmatpush1.msra.mxu0 0.0
      %1466 = vmatprep.subr.mxu0 0.0
      %1467 = vmatpush1.msra.mxu0 0.0
      %1468 = vmatprep.subr.mxu0 0.0
      %1469 = vmatpush1.msra.mxu0 0.0
      %1470 = vmatprep.subr.mxu0 0.0
      %1471 = vmatpush1.msra.mxu0 0.0
      %1472 = vmatprep.subr.mxu0 0.0
      %1473 = vmatpush1.msra.mxu0 0.0
      %1474 = vmatprep.subr.mxu0 0.0
      %1475 = vmatpush1.msra.mxu0 0.0
      %1476 = vmatprep.subr.mxu0 0.0
      %1477 = vmatpush1.msra.mxu0 0.0
      %1478 = vmatprep.subr.mxu0 0.0
      %1479 = vmatpush1.msra.mxu0 0.0
      %1480 = vmatprep.subr.mxu0 0.0
      %1481 = vmatpush1.msra.mxu0 0.0
      %1482 = vmatprep.subr.mxu0 0.0
      %1483 = vmatpush1.msra.mxu0 0.0
      %1484 = vmatprep.subr.mxu0 0.0
      %1485 = vmatpush1.msra.mxu0 0.0
      %1486 = vmatprep.subr.mxu0 0.0
      %1487 = vmatpush1.msra.mxu0 0.0
      %1488 = vmatprep.subr.mxu0 0.0
      %1489 = vmatpush1.msra.mxu0 0.0
      %1490 = vmatprep.subr.mxu0 0.0
      %1491 = vmatpush1.msra.mxu0 0.0
      %1492 = vmatprep.subr.mxu0 0.0
      %1493 = vmatpush1.msra.mxu0 0.0
      %1494 = vmatprep.subr.mxu0 0.0
      %1495 = vmatpush1.msra.mxu0 0.0
      %1496 = vmatprep.mubr.f32.mxu0 0.0
      %1497 = vmatmul.mubr.f32.gmra.mrb[0].mxu0 %v1430
      %v1498 = vpop.f32.mrb[0].mxu0
      %v1499 = vadd.f32 0.0, %v1498
      %v1500 = vpop.f32.mrb[0].mxu0
      %1501 = vdwg.mxu0
      %v1502 = vadd.f32 %v1263, %v1499
      %1503 = vrot.lane.b32.xlu0 %v772, 104
      %v1504 = vpop.permute.xlu0 %1503
      %1505 = vrot.lane.b32.xlu0 %v772, 72
      %v1506 = vpop.permute.xlu0 %1505
      %v1507 = vsel %vm783, %v1504, 0
      %v1509 = vsel %vm783, %v1506, 0
      %1511 = vmatprep.subr.mxu0 0.0
      %1512 = vmatpush1.xpose.msra.mxu0 %v1509
      %1513 = vmatprep.subr.mxu0 0.0
      %1514 = vmatpush1.xpose.msra.mxu0 0.0
      %1515 = vmatprep.subr.mxu0 0.0
      %1516 = vmatpush1.xpose.msra.mxu0 0.0
      %1517 = vmatprep.subr.mxu0 0.0
      %1518 = vmatpush1.xpose.msra.mxu0 0.0
      %1519 = vmatprep.subr.mxu0 0.0
      %1520 = vmatpush1.xpose.msra.mxu0 0.0
      %1521 = vmatprep.subr.mxu0 0.0
      %1522 = vmatpush1.xpose.msra.mxu0 0.0
      %1523 = vmatprep.subr.mxu0 0.0
      %1524 = vmatpush1.xpose.msra.mxu0 0.0
      %1525 = vmatprep.subr.mxu0 0.0
      %1526 = vmatpush1.xpose.msra.mxu0 0.0
      %1527 = vmatprep.subr.mxu0 0.0
      %1528 = vmatpush1.xpose.msra.mxu0 0.0
      %1529 = vmatprep.subr.mxu0 0.0
      %1530 = vmatpush1.xpose.msra.mxu0 0.0
      %1531 = vmatprep.subr.mxu0 0.0
      %1532 = vmatpush1.xpose.msra.mxu0 0.0
      %1533 = vmatprep.subr.mxu0 0.0
      %1534 = vmatpush1.xpose.msra.mxu0 0.0
      %1535 = vmatprep.subr.mxu0 0.0
      %1536 = vmatpush1.xpose.msra.mxu0 0.0
      %1537 = vmatprep.subr.mxu0 0.0
      %1538 = vmatpush1.xpose.msra.mxu0 0.0
      %1539 = vmatprep.subr.mxu0 0.0
      %1540 = vmatpush1.xpose.msra.mxu0 0.0
      %1541 = vmatprep.subr.mxu0 0.0
      %1542 = vmatpush1.xpose.msra.mxu0 0.0
      %1543 = vmatprep.subr.mxu0 0.0
      %1544 = vmatpush1.xpose.msra.mxu0 0.0
      %1545 = vmatprep.subr.mxu0 0.0
      %1546 = vmatpush1.xpose.msra.mxu0 0.0
      %1547 = vmatprep.subr.mxu0 0.0
      %1548 = vmatpush1.xpose.msra.mxu0 0.0
      %1549 = vmatprep.subr.mxu0 0.0
      %1550 = vmatpush1.xpose.msra.mxu0 0.0
      %1551 = vmatprep.subr.mxu0 0.0
      %1552 = vmatpush1.xpose.msra.mxu0 0.0
      %1553 = vmatprep.subr.mxu0 0.0
      %1554 = vmatpush1.xpose.msra.mxu0 0.0
      %1555 = vmatprep.subr.mxu0 0.0
      %1556 = vmatpush1.xpose.msra.mxu0 0.0
      %1557 = vmatprep.subr.mxu0 0.0
      %1558 = vmatpush1.xpose.msra.mxu0 0.0
      %1559 = vmatprep.subr.mxu0 0.0
      %1560 = vmatpush1.xpose.msra.mxu0 0.0
      %1561 = vmatprep.subr.mxu0 0.0
      %1562 = vmatpush1.xpose.msra.mxu0 0.0
      %1563 = vmatprep.subr.mxu0 0.0
      %1564 = vmatpush1.xpose.msra.mxu0 0.0
      %1565 = vmatprep.subr.mxu0 0.0
      %1566 = vmatpush1.xpose.msra.mxu0 0.0
      %1567 = vmatprep.subr.mxu0 0.0
      %1568 = vmatpush1.xpose.msra.mxu0 0.0
      %1569 = vmatprep.subr.mxu0 0.0
      %1570 = vmatpush1.xpose.msra.mxu0 0.0
      %1571 = vmatprep.subr.mxu0 0.0
      %1572 = vmatpush1.xpose.msra.mxu0 0.0
      %1573 = vmatprep.subr.mxu0 0.0
      %1574 = vmatpush1.xpose.msra.mxu0 0.0
      %1575 = vmatprep.mubr.f32.mxu0 0.0
      %1576 = vmatmul.mubr.f32.gmra.mrb[0].mxu0 %v1507
      %v1577 = vpop.f32.mrb[0].mxu0
      %v1578 = vadd.f32 0.0, %v1577
      %v1579 = vpop.f32.mrb[0].mxu0
      %1580 = vdwg.mxu0
      %v1581 = vsel %vm783, %v1578, -inf
      %1582 = vmax.xlane.f32.xlu0 %v1581
      %v1583 = vpop.xlane.xlu0 %1582
      %v1584 = vsub.f32 %v1578, %v1583
      %v1585 = vmul.f32 %v1584, 1.442695
      %v1586 = vpow.pop %v1585
      %v1587 = vsel %vm783, %v1586, 0.0
      %1588 = vadd.xlane.f32.xlu0 %v1587
      %v1589 = vpop.xlane.xlu0 %1588
      %v1590 = vrcp.pop %v1589
      %v1591 = vmul.f32 %v1586, %v1590
      %1592 = vrot.lane.b32.xlu0 %v772, 40
      %v1593 = vpop.permute.xlu0 %1592
      %v1596 = vsel %vm783, %v1591, 0
      %1598 = vmatprep.subr.mxu0 0.0
      %1599 = vmatpush1.msra.mxu0 %v1593
      %1600 = vmatprep.subr.mxu0 0.0
      %1601 = vmatpush1.msra.mxu0 0.0
      %1602 = vmatprep.subr.mxu0 0.0
      %1603 = vmatpush1.msra.mxu0 0.0
      %1604 = vmatprep.subr.mxu0 0.0
      %1605 = vmatpush1.msra.mxu0 0.0
      %1606 = vmatprep.subr.mxu0 0.0
      %1607 = vmatpush1.msra.mxu0 0.0
      %1608 = vmatprep.subr.mxu0 0.0
      %1609 = vmatpush1.msra.mxu0 0.0
      %1610 = vmatprep.subr.mxu0 0.0
      %1611 = vmatpush1.msra.mxu0 0.0
      %1612 = vmatprep.subr.mxu0 0.0
      %1613 = vmatpush1.msra.mxu0 0.0
      %1614 = vmatprep.subr.mxu0 0.0
      %1615 = vmatpush1.msra.mxu0 0.0
      %1616 = vmatprep.subr.mxu0 0.0
      %1617 = vmatpush1.msra.mxu0 0.0
      %1618 = vmatprep.subr.mxu0 0.0
      %1619 = vmatpush1.msra.mxu0 0.0
      %1620 = vmatprep.subr.mxu0 0.0
      %1621 = vmatpush1.msra.mxu0 0.0
      %1622 = vmatprep.subr.mxu0 0.0
      %1623 = vmatpush1.msra.mxu0 0.0
      %1624 = vmatprep.subr.mxu0 0.0
      %1625 = vmatpush1.msra.mxu0 0.0
      %1626 = vmatprep.subr.mxu0 0.0
      %1627 = vmatpush1.msra.mxu0 0.0
      %1628 = vmatprep.subr.mxu0 0.0
      %1629 = vmatpush1.msra.mxu0 0.0
      %1630 = vmatprep.subr.mxu0 0.0
      %1631 = vmatpush1.msra.mxu0 0.0
      %1632 = vmatprep.subr.mxu0 0.0
      %1633 = vmatpush1.msra.mxu0 0.0
      %1634 = vmatprep.subr.mxu0 0.0
      %1635 = vmatpush1.msra.mxu0 0.0
      %1636 = vmatprep.subr.mxu0 0.0
      %1637 = vmatpush1.msra.mxu0 0.0
      %1638 = vmatprep.subr.mxu0 0.0
      %1639 = vmatpush1.msra.mxu0 0.0
      %1640 = vmatprep.subr.mxu0 0.0
      %1641 = vmatpush1.msra.mxu0 0.0
      %1642 = vmatprep.subr.mxu0 0.0
      %1643 = vmatpush1.msra.mxu0 0.0
      %1644 = vmatprep.subr.mxu0 0.0
      %1645 = vmatpush1.msra.mxu0 0.0
      %1646 = vmatprep.subr.mxu0 0.0
      %1647 = vmatpush1.msra.mxu0 0.0
      %1648 = vmatprep.subr.mxu0 0.0
      %1649 = vmatpush1.msra.mxu0 0.0
      %1650 = vmatprep.subr.mxu0 0.0
      %1651 = vmatpush1.msra.mxu0 0.0
      %1652 = vmatprep.subr.mxu0 0.0
      %1653 = vmatpush1.msra.mxu0 0.0
      %1654 = vmatprep.subr.mxu0 0.0
      %1655 = vmatpush1.msra.mxu0 0.0
      %1656 = vmatprep.subr.mxu0 0.0
      %1657 = vmatpush1.msra.mxu0 0.0
      %1658 = vmatprep.subr.mxu0 0.0
      %1659 = vmatpush1.msra.mxu0 0.0
      %1660 = vmatprep.subr.mxu0 0.0
      %1661 = vmatpush1.msra.mxu0 0.0
      %1662 = vmatprep.mubr.f32.mxu0 0.0
      %1663 = vmatmul.mubr.f32.gmra.mrb[0].mxu0 %v1596
      %v1664 = vpop.f32.mrb[0].mxu0
      %v1665 = vadd.f32 0.0, %v1664
      %v1666 = vpop.f32.mrb[0].mxu0
      %1667 = vdwg.mxu0
      %v1669 = vsel %vm783, %v1665, 0
      %1671 = vmatprep.subr.mxu0 0.0
      %1672 = vmatpush1.msra.mxu0 %v778
      %1673 = vmatprep.subr.mxu0 0.0
      %1674 = vmatpush1.msra.mxu0 0.0
      %1675 = vmatprep.subr.mxu0 0.0
      %1676 = vmatpush1.msra.mxu0 0.0
      %1677 = vmatprep.subr.mxu0 0.0
      %1678 = vmatpush1.msra.mxu0 0.0
      %1679 = vmatprep.subr.mxu0 0.0
      %1680 = vmatpush1.msra.mxu0 0.0
      %1681 = vmatprep.subr.mxu0 0.0
      %1682 = vmatpush1.msra.mxu0 0.0
      %1683 = vmatprep.subr.mxu0 0.0
      %1684 = vmatpush1.msra.mxu0 0.0
      %1685 = vmatprep.subr.mxu0 0.0
      %1686 = vmatpush1.msra.mxu0 0.0
      %1687 = vmatprep.subr.mxu0 0.0
      %1688 = vmatpush1.msra.mxu0 0.0
      %1689 = vmatprep.subr.mxu0 0.0
      %1690 = vmatpush1.msra.mxu0 0.0
      %1691 = vmatprep.subr.mxu0 0.0
      %1692 = vmatpush1.msra.mxu0 0.0
      %1693 = vmatprep.subr.mxu0 0.0
      %1694 = vmatpush1.msra.mxu0 0.0
      %1695 = vmatprep.subr.mxu0 0.0
      %1696 = vmatpush1.msra.mxu0 0.0
      %1697 = vmatprep.subr.mxu0 0.0
      %1698 = vmatpush1.msra.mxu0 0.0
      %1699 = vmatprep.subr.mxu0 0.0
      %1700 = vmatpush1.msra.mxu0 0.0
      %1701 = vmatprep.subr.mxu0 0.0
      %1702 = vmatpush1.msra.mxu0 0.0
      %1703 = vmatprep.subr.mxu0 0.0
      %1704 = vmatpush1.msra.mxu0 0.0
      %1705 = vmatprep.subr.mxu0 0.0
      %1706 = vmatpush1.msra.mxu0 0.0
      %1707 = vmatprep.subr.mxu0 0.0
      %1708 = vmatpush1.msra.mxu0 0.0
      %1709 = vmatprep.subr.mxu0 0.0
      %1710 = vmatpush1.msra.mxu0 0.0
      %1711 = vmatprep.subr.mxu0 0.0
      %1712 = vmatpush1.msra.mxu0 0.0
      %1713 = vmatprep.subr.mxu0 0.0
      %1714 = vmatpush1.msra.mxu0 0.0
      %1715 = vmatprep.subr.mxu0 0.0
      %1716 = vmatpush1.msra.mxu0 0.0
      %1717 = vmatprep.subr.mxu0 0.0
      %1718 = vmatpush1.msra.mxu0 0.0
      %1719 = vmatprep.subr.mxu0 0.0
      %1720 = vmatpush1.msra.mxu0 0.0
      %1721 = vmatprep.subr.mxu0 0.0
      %1722 = vmatpush1.msra.mxu0 0.0
      %1723 = vmatprep.subr.mxu0 0.0
      %1724 = vmatpush1.msra.mxu0 0.0
      %1725 = vmatprep.subr.mxu0 0.0
      %1726 = vmatpush1.msra.mxu0 0.0
      %1727 = vmatprep.subr.mxu0 0.0
      %1728 = vmatpush1.msra.mxu0 0.0
      %1729 = vmatprep.subr.mxu0 0.0
      %1730 = vmatpush1.msra.mxu0 0.0
      %1731 = vmatprep.subr.mxu0 0.0
      %1732 = vmatpush1.msra.mxu0 0.0
      %1733 = vmatprep.subr.mxu0 0.0
      %1734 = vmatpush1.msra.mxu0 0.0
      %1735 = vmatprep.mubr.f32.mxu0 0.0
      %1736 = vmatmul.mubr.f32.gmra.mrb[0].mxu0 %v1669
      %v1737 = vpop.f32.mrb[0].mxu0
      %v1738 = vadd.f32 0.0, %v1737
      %v1739 = vpop.f32.mrb[0].mxu0
      %1740 = vdwg.mxu0
      %v1741 = vadd.f32 %v1502, %v1738
      %v1742 = vadd.f32 %v689, %v1741
      %v1743 = vld [vmem:[%s626] sm:$0x1]
      %v1744 = vld [vmem:[%s629] sm:$0x1]
      %v1745 = vsel %vm701, %v1742, 0.0
      %1746 = vadd.xlane.f32.xlu0 %v1745
      %v1747 = vpop.xlane.xlu0 %1746
      %v1748 = vrcp.pop 32.0
      %v1749 = vmul.f32 %v1747, %v1748
      %v1750 = vsub.f32 %v1742, %v1749
      %v1751 = vmul.f32 %v1750, %v1750
      %v1752 = vsel %vm701, %v1751, 0.0
      %1753 = vadd.xlane.f32.xlu0 %v1752
      %v1754 = vpop.xlane.xlu0 %1753
      %v1755 = vmul.f32 %v1754, %v1748
      %v1756 = vadd.f32 %v1755, 1e-12
      %v1757 = vrsqrt.pop %v1756
      %v1758 = vmul.f32 %v1750, %v1757
      %v1760 = vlaneseq
      %v1761 = vshrl.u32 %v1760, 7
      %v1762 = vsub.s32 0, %v1761
      %v1763 = vrot.slane %v1743, %v1762
      %v1765 = vmul.f32 %v1758, %v1763
      %v1767 = vlaneseq
      %v1768 = vshrl.u32 %v1767, 7
      %v1769 = vsub.s32 0, %v1768
      %v1770 = vrot.slane %v1744, %v1769
      %v1772 = vadd.f32 %v1765, %v1770
      %v1773 = vld [vmem:[%s634] sm:$0xff]
      %v1774 = vld [vmem:[%s634 + $0x8] sm:$0xff]
      %v1775 = vld [vmem:[%s634 + $0x10] sm:$0xff]
      %v1776 = vld [vmem:[%s634 + $0x18] sm:$0xff]
      %v1777 = vld [vmem:[%s637] sm:$0x1]
      %v1779 = vlaneseq
      %v1780 = vshrl.u32 %v1779, 7
      %v1781 = vsub.s32 0, %v1780
      %v1782 = vrot.slane %v1777, %v1781
      %v1785 = vsel %vm701, %v1772, 0
      %1787 = vmatprep.subr.mxu0 0.0
      %1788 = vmatpush1.msra.mxu0 %v1773
      %1789 = vmatprep.subr.mxu0 0.0
      %1790 = vmatpush1.msra.mxu0 %v1774
      %1791 = vmatprep.subr.mxu0 0.0
      %1792 = vmatpush1.msra.mxu0 %v1775
      %1793 = vmatprep.subr.mxu0 0.0
      %1794 = vmatpush1.msra.mxu0 %v1776
      %1795 = vmatprep.subr.mxu0 0.0
      %1796 = vmatpush1.msra.mxu0 0.0
      %1797 = vmatprep.subr.mxu0 0.0
      %1798 = vmatpush1.msra.mxu0 0.0
      %1799 = vmatprep.subr.mxu0 0.0
      %1800 = vmatpush1.msra.mxu0 0.0
      %1801 = vmatprep.subr.mxu0 0.0
      %1802 = vmatpush1.msra.mxu0 0.0
      %1803 = vmatprep.subr.mxu0 0.0
      %1804 = vmatpush1.msra.mxu0 0.0
      %1805 = vmatprep.subr.mxu0 0.0
      %1806 = vmatpush1.msra.mxu0 0.0
      %1807 = vmatprep.subr.mxu0 0.0
      %1808 = vmatpush1.msra.mxu0 0.0
      %1809 = vmatprep.subr.mxu0 0.0
      %1810 = vmatpush1.msra.mxu0 0.0
      %1811 = vmatprep.subr.mxu0 0.0
      %1812 = vmatpush1.msra.mxu0 0.0
      %1813 = vmatprep.subr.mxu0 0.0
      %1814 = vmatpush1.msra.mxu0 0.0
      %1815 = vmatprep.subr.mxu0 0.0
      %1816 = vmatpush1.msra.mxu0 0.0
      %1817 = vmatprep.subr.mxu0 0.0
      %1818 = vmatpush1.msra.mxu0 0.0
      %1819 = vmatprep.subr.mxu0 0.0
      %1820 = vmatpush1.msra.mxu0 0.0
      %1821 = vmatprep.subr.mxu0 0.0
      %1822 = vmatpush1.msra.mxu0 0.0
      %1823 = vmatprep.subr.mxu0 0.0
      %1824 = vmatpush1.msra.mxu0 0.0
      %1825 = vmatprep.subr.mxu0 0.0
      %1826 = vmatpush1.msra.mxu0 0.0
      %1827 = vmatprep.subr.mxu0 0.0
      %1828 = vmatpush1.msra.mxu0 0.0
      %1829 = vmatprep.subr.mxu0 0.0
      %1830 = vmatpush1.msra.mxu0 0.0
      %1831 = vmatprep.subr.mxu0 0.0
      %1832 = vmatpush1.msra.mxu0 0.0
      %1833 = vmatprep.subr.mxu0 0.0
      %1834 = vmatpush1.msra.mxu0 0.0
      %1835 = vmatprep.subr.mxu0 0.0
      %1836 = vmatpush1.msra.mxu0 0.0
      %1837 = vmatprep.subr.mxu0 0.0
      %1838 = vmatpush1.msra.mxu0 0.0
      %1839 = vmatprep.subr.mxu0 0.0
      %1840 = vmatpush1.msra.mxu0 0.0
      %1841 = vmatprep.subr.mxu0 0.0
      %1842 = vmatpush1.msra.mxu0 0.0
      %1843 = vmatprep.subr.mxu0 0.0
      %1844 = vmatpush1.msra.mxu0 0.0
      %1845 = vmatprep.subr.mxu0 0.0
      %1846 = vmatpush1.msra.mxu0 0.0
      %1847 = vmatprep.subr.mxu0 0.0
      %1848 = vmatpush1.msra.mxu0 0.0
      %1849 = vmatprep.subr.mxu0 0.0
      %1850 = vmatpush1.msra.mxu0 0.0
      %1851 = vmatprep.mubr.f32.mxu0 0.0
      %1852 = vmatmul.mubr.f32.gmra.mrb[0].mxu0 %v1785
      %v1853 = vpop.f32.mrb[0].mxu0
      %v1854 = vadd.f32 %v1782, %v1853
      %v1855 = vpop.f32.mrb[0].mxu0
      %1856 = vdwg.mxu0
      %v1857 = vmul.f32 %v1854, 0.5
      %v1858 = vmul.f32 %v1854, 0.044715
      %v1859 = vmul.f32 %v1858, %v1854
      %v1860 = vmul.f32 %v1859, %v1854
      %v1861 = vadd.f32 %v1854, %v1860
      %v1862 = vmul.f32 %v1861, 0.7978846
      %v1863 = vtanh.pop %v1862
      %v1864 = vadd.f32 %v1863, 1.0
      %v1865 = vmul.f32 %v1857, %v1864
      %v1866 = vld [vmem:[%s642] sm:$0xff]
      %v1867 = vld [vmem:[%s642 + $0x8] sm:$0xff]
      %v1868 = vld [vmem:[%s642 + $0x10] sm:$0xff]
      %v1869 = vld [vmem:[%s642 + $0x18] sm:$0xff]
      %v1870 = vld [vmem:[%s642 + $0x20] sm:$0xff]
      %v1871 = vld [vmem:[%s642 + $0x28] sm:$0xff]
      %v1872 = vld [vmem:[%s642 + $0x30] sm:$0xff]
      %v1873 = vld [vmem:[%s642 + $0x38] sm:$0xff]
      %v1874 = vld [vmem:[%s645] sm:$0x1]
      %v1876 = vlaneseq
      %v1877 = vshrl.u32 %v1876, 7
      %v1878 = vsub.s32 0, %v1877
      %v1879 = vrot.slane %v1874, %v1878
      %vm1881 = vcmask 523264
      %v1883 = vsel %vm1881, %v1865, 0
      %1885 = vmatprep.subr.mxu0 0.0
      %1886 = vmatpush1.msra.mxu0 %v1866
      %1887 = vmatprep.subr.mxu0 0.0
      %1888 = vmatpush1.msra.mxu0 %v1867
      %1889 = vmatprep.subr.mxu0 0.0
      %1890 = vmatpush1.msra.mxu0 %v1868
      %1891 = vmatprep.subr.mxu0 0.0
      %1892 = vmatpush1.msra.mxu0 %v1869
      %1893 = vmatprep.subr.mxu0 0.0
      %1894 = vmatpush1.msra.mxu0 %v1870
      %1895 = vmatprep.subr.mxu0 0.0
      %1896 = vmatpush1.msra.mxu0 %v1871
      %1897 = vmatprep.subr.mxu0 0.0
      %1898 = vmatpush1.msra.mxu0 %v1872
      %1899 = vmatprep.subr.mxu0 0.0
      %1900 = vmatpush1.msra.mxu0 %v1873
      %1901 = vmatprep.subr.mxu0 0.0
      %1902 = vmatpush1.msra.mxu0 0.0
      %1903 = vmatprep.subr.mxu0 0.0
      %1904 = vmatpush1.msra.mxu0 0.0
      %1905 = vmatprep.subr.mxu0 0.0
      %1906 = vmatpush1.msra.mxu0 0.0
      %1907 = vmatprep.subr.mxu0 0.0
      %1908 = vmatpush1.msra.mxu0 0.0
      %1909 = vmatprep.subr.mxu0 0.0
      %1910 = vmatpush1.msra.mxu0 0.0
      %1911 = vmatprep.subr.mxu0 0.0
      %1912 = vmatpush1.msra.mxu0 0.0
      %1913 = vmatprep.subr.mxu0 0.0
      %1914 = vmatpush1.msra.mxu0 0.0
      %1915 = vmatprep.subr.mxu0 0.0
      %1916 = vmatpush1.msra.mxu0 0.0
      %1917 = vmatprep.subr.mxu0 0.0
      %1918 = vmatpush1.msra.mxu0 0.0
      %1919 = vmatprep.subr.mxu0 0.0
      %1920 = vmatpush1.msra.mxu0 0.0
      %1921 = vmatprep.subr.mxu0 0.0
      %1922 = vmatpush1.msra.mxu0 0.0
      %1923 = vmatprep.subr.mxu0 0.0
      %1924 = vmatpush1.msra.mxu0 0.0
      %1925 = vmatprep.subr.mxu0 0.0
      %1926 = vmatpush1.msra.mxu0 0.0
      %1927 = vmatprep.subr.mxu0 0.0
      %1928 = vmatpush1.msra.mxu0 0.0
      %1929 = vmatprep.subr.mxu0 0.0
      %1930 = vmatpush1.msra.mxu0 0.0
      %1931 = vmatprep.subr.mxu0 0.0
      %1932 = vmatpush1.msra.mxu0 0.0
      %1933 = vmatprep.subr.mxu0 0.0
      %1934 = vmatpush1.msra.mxu0 0.0
      %1935 = vmatprep.subr.mxu0 0.0
      %1936 = vmatpush1.msra.mxu0 0.0
      %1937 = vmatprep.subr.mxu0 0.0
      %1938 = vmatpush1.msra.mxu0 0.0
      %1939 = vmatprep.subr.mxu0 0.0
      %1940 = vmatpush1.msra.mxu0 0.0
      %1941 = vmatprep.subr.mxu0 0.0
      %1942 = vmatpush1.msra.mxu0 0.0
      %1943 = vmatprep.subr.mxu0 0.0
      %1944 = vmatpush1.msra.mxu0 0.0
      %1945 = vmatprep.subr.mxu0 0.0
      %1946 = vmatpush1.msra.mxu0 0.0
      %1947 = vmatprep.subr.mxu0 0.0
      %1948 = vmatpush1.msra.mxu0 0.0
      %1949 = vmatprep.mubr.f32.mxu0 0.0
      %1950 = vmatmul.mubr.f32.gmra.mrb[0].mxu0 %v1883
      %v1951 = vpop.f32.mrb[0].mxu0
      %v1952 = vadd.f32 %v1879, %v1951
      %v1953 = vpop.f32.mrb[0].mxu0
      %1954 = vdwg.mxu0
      %v1955 = vadd.f32 %v1772, %v1952
      %v1956 = vld [vmem:[%s648] sm:$0x1]
      %v1957 = vld [vmem:[%s651] sm:$0x1]
      %v1958 = vsel %vm701, %v1955, 0.0
      %1959 = vadd.xlane.f32.xlu0 %v1958
      %v1960 = vpop.xlane.xlu0 %1959
      %v1961 = vmul.f32 %v1960, %v1748
      %v1962 = vsub.f32 %v1955, %v1961
      %v1963 = vmul.f32 %v1962, %v1962
      %v1964 = vsel %vm701, %v1963, 0.0
      %1965 = vadd.xlane.f32.xlu0 %v1964
      %v1966 = vpop.xlane.xlu0 %1965
      %v1967 = vmul.f32 %v1966, %v1748
      %v1968 = vadd.f32 %v1967, 1e-12
      %v1969 = vrsqrt.pop %v1968
      %v1970 = vmul.f32 %v1962, %v1969
      %v1972 = vlaneseq
      %v1973 = vshrl.u32 %v1972, 7
      %v1974 = vsub.s32 0, %v1973
      %v1975 = vrot.slane %v1956, %v1974
      %v1977 = vmul.f32 %v1970, %v1975
      %v1979 = vlaneseq
      %v1980 = vshrl.u32 %v1979, 7
      %v1981 = vsub.s32 0, %v1980
      %v1982 = vrot.slane %v1957, %v1981
      %v1984 = vadd.f32 %v1977, %v1982
      %1985 = vst.msk [vmem:[#allocation2] sm:$0xff] %vm701, %v1984
      %p1986 = scmp.eq.s32.totalorder %s26, 6
      // Predicated region
      $region85: #{roberta_forward.1} parent=79 // pred_check
        %p1987 = pneg %p1986
      $region86: #{roberta_forward.1} parent=79 // pred_check_branch
        %1989 = sbr.rel (%p1987) target = $region88
      $region87: #{roberta_forward.1} parent=79 // pred_region
        %1990 = vst.msk [vmem:[%s15] sm:$0xff] %vm701, %v1984
      $region88: #{roberta_forward.1} parent=79 // pred_fallthru
        _
      %p1991 = scmp.eq.s32.totalorder %s26, 7
      // Predicated region
      $region89: #{roberta_forward.1} parent=79 // pred_check
        %p1992 = pneg %p1991
      $region90: #{roberta_forward.1} parent=79 // pred_check_branch
        %1994 = sbr.rel (%p1992) target = $region92
      $region91: #{roberta_forward.1} parent=79 // pred_region
        %s1995 = scalar_lea.vmem %s15, 8
        %1996 = vst.msk [vmem:[%s1995] sm:$0xff] %vm701, %v1984
      $region92: #{roberta_forward.1} parent=79 // pred_fallthru
        _
      // Predicated region
      $region93: #{roberta_forward.1} parent=79 // pred_check
        %p1997 = pneg %p414
      $region94: #{roberta_forward.1} parent=79 // pred_check_branch
        %1999 = sbr.rel (%p1997) target = $region96
      $region95: #{roberta_forward.1} parent=79 // pred_region
        _
      $region96: #{roberta_forward.1} parent=79 // pred_fallthru
        _
      // Predicated region
      $region97: #{roberta_forward.1} parent=79 // pred_check
        %p2000 = pneg %p414
      $region98: #{roberta_forward.1} parent=79 // pred_check_branch
        %2002 = sbr.rel (%p2000) target = $region100
      $region99: #{roberta_forward.1} parent=79 // pred_region
        _
      $region100: #{roberta_forward.1} parent=79 // pred_fallthru
        _
    $region80: #{roberta_forward.1} parent=5 // pred_fallthru
      _
    %p2003 = scmp.le.s32.totalorder 2, %s21
    // Predicated region
    $region101: #{roberta_forward.1} parent=5 // pred_check
      %p2004 = pneg %p2003
    $region102: #{roberta_forward.1} parent=5 // pred_check_branch
      %2006 = sbr.rel (%p2004) target = $region104
    $region103: #{roberta_forward.1} parent=5 // pred_region
      %s2007 = ssub.s32 %s21, 2
    $region104: #{roberta_forward.1} parent=5 // pred_fallthru
      _
  $region6: #{roberta_forward.1} parent=0 // loop_footer
    %s25 = sadd.s32 1, %s21
  $region7: #{roberta_forward.1} parent=0 // loop_footer_branch
    %20 = sbr.rel target = $region3
  $region8: #{roberta_forward.1} parent=0 // loop_exit
    _

</llo_original>
